<compile_context>
chip_gen: v7x
topology: tpu7x:2x2x1
jax: 0.10.0
libtpu: 0.0.40
codegen_flags: <defaults>
</compile_context>

<pallas_src>
import functools

import jax
import jax.numpy as jnp
from jax.experimental import pallas as pl
from jax.experimental.pallas import tpu as pltpu

# ----------------------------- model hyper-params -----------------------------
IN_DIM = 10
HIDDEN = 32
NUM_LAYERS = 4
NEG_SLOPE = 0.2
STRONG_CONVEXITY = 0.5
BATCH = 8


def _round_up(n, m):
    return ((n + m - 1) // m) * m


# ----------------------------------- kernel ------------------------------------
def icnn_kernel(x_ref, w_ref, wg_ref, out_ref, gall_ref, *,
                num_layers, hidden, in_dim, neg_slope, strong_convexity,
                off_wzf, off_wzb, off_wzl):
    """ICNN forward (scalar fwd + manual bwd), batch-on-lanes layout.

    x_ref    : (D+1, TB) f32   rows 0..D-1 = x^T, row D = ones (bias feed)
    w_ref    : (R, 128)  bf16  unified weight slab:
                 rows [0, 2LH+1)              : W_proj = [aq | 0; bl | blb; aql | 0]
                 rows [off_wzf, +.(L-1)H)     : wz[k]        (forward chain)
                 rows [off_wzb, +.(L-1)H)     : wz[k]^T      (backward chain)
                 rows [off_wzl, +H), lane 0   : wzl^T
    wg_ref   : (D, 2LH+2) bf16 fused backward weight [aq^T | bl^T | aql^T | bll^T]
    out_ref  : (D, TB)   f32   lane-dense output block
    gall_ref : (2LH+2, TB) f32 scratch holding [quad parts | lin parts | 2*u_last | 1]
    """
    L, H, D = num_layers, hidden, in_dim
    LH = L * H
    cdt = w_ref.dtype                          # MXU operand dtype (bf16 by default)

    x_aug = x_ref[...]                                             # (D+1, TB) f32
    x_mx = x_aug.astype(cdt)

    # ---- ONE fused MXU matmul for every layer's x-projection (+ biases) -------
    w_proj = w_ref[0:2 * LH + 1, 0:D + 1]                          # bf16 (2LH+1, D+1)
    proj = jnp.dot(w_proj, x_mx, preferred_element_type=jnp.float32)  # (2LH+1, TB)

    u_all = proj[:LH, :]                        # u_k = aq[k] @ x^T          (LH, TB)
    lin_all = proj[LH:2 * LH, :]                # bl[k] @ x^T + blb[k]       (LH, TB)
    u_last = proj[2 * LH:2 * LH + 1, :]         # aql @ x^T                  (1, TB)
    base_all = u_all * u_all + lin_all          # pre-activation minus wz term
    u2_all = u_all + u_all                      # 2*u_k (backward reuse)

    # final-layer rows of the fused-gradient scratch (quad via aql, lin via bll)
    gall_ref[2 * LH:2 * LH + 1, :] = u_last + u_last
    gall_ref[2 * LH + 1:2 * LH + 2, :] = jnp.ones_like(u_last)

    # ---- forward chain (inherently sequential through wz) ---------------------
    dmask = []
    z = None
    for k in range(L):
        pre = base_all[k * H:(k + 1) * H, :]
        if k > 0:
            wz_k = w_ref[off_wzf + (k - 1) * H:off_wzf + k * H, 0:H]   # (H, H)
            pre = pre + jnp.dot(wz_k, z.astype(cdt),
                                preferred_element_type=jnp.float32)
        d_k = jnp.where(pre > 0, 1.0, neg_slope)      # leaky-relu derivative mask
        z = pre * d_k                                 # == leaky_relu(pre)
        dmask.append(d_k)

    # ---- backward: d(scalar)/dx with grad_outputs = ones ----------------------
    # d out / d z_{L-1} = wzl^T, broadcast over the batch lanes
    grad_z = w_ref[off_wzl:off_wzl + H, 0:1].astype(jnp.float32)       # (H, 1)
    for k in range(L - 1, -1, -1):
        grad_pre = grad_z * dmask[k]                                   # (H, TB)
        # write quad / lin parts straight into the scratch (no concatenate);
        # these stores overlap with the serialized wz^T chain matmuls below.
        gall_ref[k * H:(k + 1) * H, :] = grad_pre * u2_all[k * H:(k + 1) * H, :]
        gall_ref[LH + k * H:LH + (k + 1) * H, :] = grad_pre
        if k > 0:
            wzT_k = w_ref[off_wzb + (k - 1) * H:off_wzb + k * H, 0:H]  # wz[k-1]^T
            grad_z = jnp.dot(wzT_k, grad_pre.astype(cdt),
                             preferred_element_type=jnp.float32)

    # ---- every x-gradient contribution folded into ONE matmul -----------------
    g = jnp.dot(wg_ref[...], gall_ref[...].astype(cdt),
                preferred_element_type=jnp.float32)                    # (D, TB)

    out_ref[...] = ((1.0 - strong_convexity) * g
                    + strong_convexity * x_aug[0:D, :]).astype(out_ref.dtype)


# --------------------------- host-side param packing ---------------------------
def pack_params(params, compute_dtype=jnp.bfloat16):
    """Pack PyTorch-style (out, in) weights into two kernel slabs.

    Returns (w_slab, w_g, dims) where dims carries the static layout offsets.
    """
    wz, wzl, aq, aql, bl, blb, bll = params
    L, H, D = aq.shape[0], aq.shape[1], aq.shape[2]
    LH = L * H
    f32 = jnp.float32

    aq_rows = aq.reshape(LH, D).astype(f32)
    bl_rows = bl.reshape(LH, D).astype(f32)
    blb_col = blb.reshape(LH, 1).astype(f32)
    aql_row = aql.reshape(1, D).astype(f32)
    bll_row = bll.reshape(1, D).astype(f32)

    # fused projection block (2LH+1, D+1); last column is the bias (ones row of x^T)
    w_proj = jnp.concatenate([
        jnp.concatenate([aq_rows, jnp.zeros((LH, 1), f32)], axis=1),
        jnp.concatenate([bl_rows, blb_col], axis=1),
        jnp.concatenate([aql_row, jnp.zeros((1, 1), f32)], axis=1),
    ], axis=0)

    wz_fwd = wz.reshape((L - 1) * H, H).astype(f32)                    # wz[k]
    wz_bwd = jnp.transpose(wz, (0, 2, 1)).reshape((L - 1) * H, H).astype(f32)  # wz[k]^T
    wzl_col = wzl.reshape(H, 1).astype(f32)

    # one 128-lane slab; every block starts at a 32-sublane-aligned row offset
    lanes = 128
    assert D + 1 <= lanes and H <= lanes
    off_wzf = _round_up(2 * LH + 1, 32)
    off_wzb = _round_up(off_wzf + (L - 1) * H, 32)
    off_wzl = _round_up(off_wzb + (L - 1) * H, 32)
    rows = _round_up(off_wzl + H, 32)

    slab = jnp.zeros((rows, lanes), f32)
    slab = slab.at[0:2 * LH + 1, :D + 1].set(w_proj)
    slab = slab.at[off_wzf:off_wzf + (L - 1) * H, :H].set(wz_fwd)
    slab = slab.at[off_wzb:off_wzb + (L - 1) * H, :H].set(wz_bwd)
    slab = slab.at[off_wzl:off_wzl + H, 0:1].set(wzl_col)
    slab = slab.astype(compute_dtype)

    # fused backward weight (D, 2LH+2) = [aq^T | bl^T | aql^T | bll^T]
    w_g = jnp.concatenate([aq_rows.T, bl_rows.T, aql_row.T, bll_row.T],
                          axis=1).astype(compute_dtype)

    dims = (L, H, D, off_wzf, off_wzb, off_wzl)
    return slab, w_g, dims


# ---------------------------------- wrapper ------------------------------------
def icnn_forward(x, packed, *, neg_slope=NEG_SLOPE,
                 strong_convexity=STRONG_CONVEXITY, max_tile_b=1024):
    w_slab, w_g, dims = packed
    L, H, D, off_wzf, off_wzb, off_wzl = dims
    LH = L * H
    B = x.shape[0]
    assert x.shape[1] == D

    # Batch tiling (batch lives on lanes -> tile_b multiple of 128).
    #  - once B > 128, use at least 2 grid steps so dimension_semantics=("parallel",)
    #    can shard across v7x's two TensorCores (negligible cost on 1-TC chips);
    #  - cap the tile at ~1024 rows (~6-7 MB live f32 intermediates) so the default
    #    scoped VMEM limit is fine on v5e(16 MiB)/v6e(32 MiB)/v7x(32 MiB).
    n_tiles = max(1, -(-B // max_tile_b))
    if n_tiles == 1 and B > 128:
        n_tiles = 2
    tile_b = _round_up(-(-B // n_tiles), 128)
    b_pad = _round_up(B, tile_b)
    grid = (b_pad // tile_b,)

    # lane-dense layout: x^T with an appended ones row (feeds the biases through
    # the fused projection matmul); padded batch columns are sliced off at the end.
    xt = jnp.zeros((D + 1, b_pad), jnp.float32)
    xt = xt.at[:D, :B].set(x.T.astype(jnp.float32))
    xt = xt.at[D, :].set(1.0)

    kernel = functools.partial(
        icnn_kernel, num_layers=L, hidden=H, in_dim=D,
        neg_slope=neg_slope, strong_convexity=strong_convexity,
        off_wzf=off_wzf, off_wzb=off_wzb, off_wzl=off_wzl)

    flops = int(2 * b_pad * ((2 * LH + 1) * (D + 1)      # fused forward projection
                             + D * (2 * LH + 2)          # fused backward x-grad
                             + 2 * (L - 1) * H * H))     # fwd + bwd wz chain
    bytes_accessed = int(xt.size * xt.dtype.itemsize
                         + w_slab.size * w_slab.dtype.itemsize
                         + w_g.size * w_g.dtype.itemsize
                         + D * b_pad * 4)

    out_t = pl.pallas_call(
        kernel,
        out_shape=jax.ShapeDtypeStruct((D, b_pad), jnp.float32),
        grid_spec=pltpu.PrefetchScalarGridSpec(
            num_scalar_prefetch=0,
            grid=grid,
            in_specs=[
                pl.BlockSpec((D + 1, tile_b), lambda i: (0, i)),
                pl.BlockSpec(w_slab.shape, lambda i: (0, 0)),   # VMEM-resident
                pl.BlockSpec(w_g.shape, lambda i: (0, 0)),      # VMEM-resident
            ],
            out_specs=pl.BlockSpec((D, tile_b), lambda i: (0, i)),
            scratch_shapes=[pltpu.VMEM((2 * LH + 2, tile_b), jnp.float32)],
        ),
        compiler_params=pltpu.CompilerParams(
            dimension_semantics=("parallel",)),
        cost_estimate=pl.CostEstimate(flops=flops, transcendentals=0,
                                      bytes_accessed=bytes_accessed),
    )(xt, w_slab, w_g)

    return out_t[:, :B].T                                   # back to (B, D)


# ----------------------------- pure-JAX reference ------------------------------
def _scalar_ref(x, params, neg_slope=NEG_SLOPE):
    wz, wzl, aq, aql, bl, blb, bll = params
    L = aq.shape[0]
    z = (x @ aq[0].T) ** 2 + x @ bl[0].T + blb[0]
    z = jnp.where(z > 0, z, neg_slope * z)
    for k in range(1, L):
        pre = z @ wz[k - 1].T + (x @ aq[k].T) ** 2 + x @ bl[k].T + blb[k]
        z = jnp.where(pre > 0, pre, neg_slope * pre)
    return z @ wzl.T + (x @ aql.T) ** 2 + x @ bll.T          # (B, 1)


def _forward_ref(x, params):
    grad = jax.grad(lambda xi: jnp.sum(_scalar_ref(xi, params)))(x)
    return (1.0 - STRONG_CONVEXITY) * grad + STRONG_CONVEXITY * x


# ----------------------------- deterministic params ----------------------------
def init_params(key, in_dim=IN_DIM, hidden=HIDDEN, num_layers=NUM_LAYERS):
    ks = jax.random.split(key, 8)
    # wz weights: exp(N(-4, 0.1)) mirroring ICNN.initialize_weights (positive)
    wz = jnp.exp(jax.random.normal(ks[0], (num_layers - 1, hidden, hidden)) * 0.1 - 4.0)
    wzl = jnp.exp(jax.random.normal(ks[1], (1, hidden)) * 0.1 - 4.0)
    aq = jax.random.normal(ks[2], (num_layers, hidden, in_dim)) * 0.3
    aql = jax.random.normal(ks[3], (1, in_dim)) * 0.3
    bl = jax.random.normal(ks[4], (num_layers, hidden, in_dim)) * 0.3
    blb = jax.random.normal(ks[5], (num_layers, 1, hidden)) * 0.1
    bll = jax.random.normal(ks[6], (1, in_dim)) * 0.3
    params = (wz, wzl, aq, aql, bl, blb, bll)
    return jax.tree_util.tree_map(lambda a: a.astype(jnp.float32), params)


if __name__ == "__main__":
    key = jax.random.PRNGKey(0)
    kx, kp = jax.random.split(key)
    x = jax.random.normal(kx, (BATCH, IN_DIM), dtype=jnp.float32)
    params = init_params(kp)
    packed = pack_params(params)            # bf16 MXU operands by default

    out = icnn_forward(x, packed)
    out = jax.block_until_ready(out)

    ref = _forward_ref(x, params)
    assert out.shape == (BATCH, IN_DIM)
    # bf16 MXU operands -> bf16-class tolerance vs. the f32 jax.grad reference
    # (pack_params(..., compute_dtype=jnp.float32) for tighter accuracy).
    err = float(jnp.max(jnp.abs(out - ref)))
    assert jnp.allclose(out, ref, atol=3e-2, rtol=3e-2), f"max abs err {err}"

    print("KERNEL_OK")
</pallas_src>

<mosaic_0001>
module attributes {stable_mosaic.version = 11 : i64} {
  func.func @icnn_kernel(%arg0: i32, %arg1: memref<11x128xf32, #tpu.memory_space<vmem>>, %arg2: memref<512x128xbf16, #tpu.memory_space<vmem>>, %arg3: memref<10x258xbf16, #tpu.memory_space<vmem>>, %arg4: memref<10x128xf32, #tpu.memory_space<vmem>>, %arg5: memref<258x128xf32, #tpu.memory_space<vmem>>) attributes {dimension_semantics = [#tpu.dimension_semantics<parallel>], iteration_bounds = array<i64: 1>, scalar_prefetch = 0 : i64, scratch_operands = 1 : i64, tpu.core_type = #tpu.core_type<tc>, window_params = [{transform_indices = @transform_0, window_bounds = array<i64: 11, 128>}, {pipeline_mode = #tpu.pipeline_mode<synchronous>, transform_indices = @transform_1, window_bounds = array<i64: 512, 128>}, {pipeline_mode = #tpu.pipeline_mode<synchronous>, transform_indices = @transform_2, window_bounds = array<i64: 10, 258>}, {transform_indices = @transform_3, window_bounds = array<i64: 10, 128>}]} {
    %c0 = arith.constant 0 : index
    %c0_0 = arith.constant 0 : index
    %0 = vector.load %arg1[%c0, %c0_0] : memref<11x128xf32, #tpu.memory_space<vmem>>, vector<11x128xf32>
    %1 = arith.truncf %0 : vector<11x128xf32> to vector<11x128xbf16>
    %c0_1 = arith.constant 0 : index
    %c0_2 = arith.constant 0 : index
    %2 = vector.load %arg2[%c0_1, %c0_2] : memref<512x128xbf16, #tpu.memory_space<vmem>>, vector<257x11xbf16>
    %cst = arith.constant dense<0.000000e+00> : vector<257x128xf32>
    %3 = tpu.matmul %2, %1, %cst {dimension_numbers = #tpu.dot_dimension_numbers<[1], [0], [0], [1], [0, 0, 1, 1], [], []>} : vector<257x11xbf16>, vector<11x128xbf16>, vector<257x128xf32> -> vector<257x128xf32>
    %4 = vector.extract_strided_slice %3 {offsets = [0, 0], sizes = [128, 128], strides = [1, 1]} : vector<257x128xf32> to vector<128x128xf32>
    %5 = vector.extract_strided_slice %3 {offsets = [128, 0], sizes = [128, 128], strides = [1, 1]} : vector<257x128xf32> to vector<128x128xf32>
    %6 = vector.extract_strided_slice %3 {offsets = [256, 0], sizes = [1, 128], strides = [1, 1]} : vector<257x128xf32> to vector<1x128xf32>
    %7 = arith.mulf %4, %4 : vector<128x128xf32>
    %8 = arith.addf %7, %5 : vector<128x128xf32>
    %9 = arith.addf %4, %4 : vector<128x128xf32>
    %10 = arith.addf %6, %6 : vector<1x128xf32>
    %c256 = arith.constant 256 : index
    %c0_3 = arith.constant 0 : index
    %11 = vector.load %arg5[%c256, %c0_3] : memref<258x128xf32, #tpu.memory_space<vmem>>, vector<1x128xf32>
    tpu.vector_store %arg5[%c256, %c0_3], %10 {strides = array<i32>} : memref<258x128xf32, #tpu.memory_space<vmem>>, vector<1x128xf32>,
    %cst_4 = arith.constant 1.000000e+00 : f32
    %12 = vector.broadcast %cst_4 : f32 to vector<1x128xf32>
    %c257 = arith.constant 257 : index
    %c0_5 = arith.constant 0 : index
    %13 = vector.load %arg5[%c257, %c0_5] : memref<258x128xf32, #tpu.memory_space<vmem>>, vector<1x128xf32>
    tpu.vector_store %arg5[%c257, %c0_5], %12 {strides = array<i32>} : memref<258x128xf32, #tpu.memory_space<vmem>>, vector<1x128xf32>,
    %14 = vector.extract_strided_slice %8 {offsets = [0, 0], sizes = [32, 128], strides = [1, 1]} : vector<128x128xf32> to vector<32x128xf32>
    %cst_6 = arith.constant 0.000000e+00 : f32
    %15 = vector.broadcast %cst_6 : f32 to vector<32x128xf32>
    %16 = arith.cmpf ogt, %14, %15 : vector<32x128xf32>
    %cst_7 = arith.constant 1.000000e+00 : f32
    %cst_8 = arith.constant 2.000000e-01 : f32
    %17 = vector.broadcast %cst_7 : f32 to vector<32x128xf32>
    %18 = vector.broadcast %cst_8 : f32 to vector<32x128xf32>
    %19 = arith.select %16, %17, %18 : vector<32x128xi1>, vector<32x128xf32>
    %20 = arith.mulf %14, %19 : vector<32x128xf32>
    %21 = vector.extract_strided_slice %8 {offsets = [32, 0], sizes = [32, 128], strides = [1, 1]} : vector<128x128xf32> to vector<32x128xf32>
    %c288 = arith.constant 288 : index
    %c0_9 = arith.constant 0 : index
    %22 = vector.load %arg2[%c288, %c0_9] : memref<512x128xbf16, #tpu.memory_space<vmem>>, vector<32x32xbf16>
    %23 = arith.truncf %20 : vector<32x128xf32> to vector<32x128xbf16>
    %cst_10 = arith.constant dense<0.000000e+00> : vector<32x128xf32>
    %24 = tpu.matmul %22, %23, %cst_10 {dimension_numbers = #tpu.dot_dimension_numbers<[1], [0], [0], [1], [0, 0, 1, 1], [], []>} : vector<32x32xbf16>, vector<32x128xbf16>, vector<32x128xf32> -> vector<32x128xf32>
    %25 = arith.addf %21, %24 : vector<32x128xf32>
    %cst_11 = arith.constant 0.000000e+00 : f32
    %26 = vector.broadcast %cst_11 : f32 to vector<32x128xf32>
    %27 = arith.cmpf ogt, %25, %26 : vector<32x128xf32>
    %cst_12 = arith.constant 1.000000e+00 : f32
    %cst_13 = arith.constant 2.000000e-01 : f32
    %28 = vector.broadcast %cst_12 : f32 to vector<32x128xf32>
    %29 = vector.broadcast %cst_13 : f32 to vector<32x128xf32>
    %30 = arith.select %27, %28, %29 : vector<32x128xi1>, vector<32x128xf32>
    %31 = arith.mulf %25, %30 : vector<32x128xf32>
    %32 = vector.extract_strided_slice %8 {offsets = [64, 0], sizes = [32, 128], strides = [1, 1]} : vector<128x128xf32> to vector<32x128xf32>
    %c320 = arith.constant 320 : index
    %c0_14 = arith.constant 0 : index
    %33 = vector.load %arg2[%c320, %c0_14] : memref<512x128xbf16, #tpu.memory_space<vmem>>, vector<32x32xbf16>
    %34 = arith.truncf %31 : vector<32x128xf32> to vector<32x128xbf16>
    %cst_15 = arith.constant dense<0.000000e+00> : vector<32x128xf32>
    %35 = tpu.matmul %33, %34, %cst_15 {dimension_numbers = #tpu.dot_dimension_numbers<[1], [0], [0], [1], [0, 0, 1, 1], [], []>} : vector<32x32xbf16>, vector<32x128xbf16>, vector<32x128xf32> -> vector<32x128xf32>
    %36 = arith.addf %32, %35 : vector<32x128xf32>
    %cst_16 = arith.constant 0.000000e+00 : f32
    %37 = vector.broadcast %cst_16 : f32 to vector<32x128xf32>
    %38 = arith.cmpf ogt, %36, %37 : vector<32x128xf32>
    %cst_17 = arith.constant 1.000000e+00 : f32
    %cst_18 = arith.constant 2.000000e-01 : f32
    %39 = vector.broadcast %cst_17 : f32 to vector<32x128xf32>
    %40 = vector.broadcast %cst_18 : f32 to vector<32x128xf32>
    %41 = arith.select %38, %39, %40 : vector<32x128xi1>, vector<32x128xf32>
    %42 = arith.mulf %36, %41 : vector<32x128xf32>
    %43 = vector.extract_strided_slice %8 {offsets = [96, 0], sizes = [32, 128], strides = [1, 1]} : vector<128x128xf32> to vector<32x128xf32>
    %c352 = arith.constant 352 : index
    %c0_19 = arith.constant 0 : index
    %44 = vector.load %arg2[%c352, %c0_19] : memref<512x128xbf16, #tpu.memory_space<vmem>>, vector<32x32xbf16>
    %45 = arith.truncf %42 : vector<32x128xf32> to vector<32x128xbf16>
    %cst_20 = arith.constant dense<0.000000e+00> : vector<32x128xf32>
    %46 = tpu.matmul %44, %45, %cst_20 {dimension_numbers = #tpu.dot_dimension_numbers<[1], [0], [0], [1], [0, 0, 1, 1], [], []>} : vector<32x32xbf16>, vector<32x128xbf16>, vector<32x128xf32> -> vector<32x128xf32>
    %47 = arith.addf %43, %46 : vector<32x128xf32>
    %cst_21 = arith.constant 0.000000e+00 : f32
    %48 = vector.broadcast %cst_21 : f32 to vector<32x128xf32>
    %49 = arith.cmpf ogt, %47, %48 : vector<32x128xf32>
    %cst_22 = arith.constant 1.000000e+00 : f32
    %cst_23 = arith.constant 2.000000e-01 : f32
    %50 = vector.broadcast %cst_22 : f32 to vector<32x128xf32>
    %51 = vector.broadcast %cst_23 : f32 to vector<32x128xf32>
    %52 = arith.select %49, %50, %51 : vector<32x128xi1>, vector<32x128xf32>
    %c480 = arith.constant 480 : index
    %c0_24 = arith.constant 0 : index
    %53 = vector.load %arg2[%c480, %c0_24] : memref<512x128xbf16, #tpu.memory_space<vmem>>, vector<32x1xbf16>
    %54 = arith.extf %53 : vector<32x1xbf16> to vector<32x1xf32>
    %55 = vector.broadcast %54 : vector<32x1xf32> to vector<32x128xf32>
    %56 = arith.mulf %55, %52 : vector<32x128xf32>
    %57 = vector.extract_strided_slice %9 {offsets = [96, 0], sizes = [32, 128], strides = [1, 1]} : vector<128x128xf32> to vector<32x128xf32>
    %58 = arith.mulf %56, %57 : vector<32x128xf32>
    %c96 = arith.constant 96 : index
    %c0_25 = arith.constant 0 : index
    %59 = vector.load %arg5[%c96, %c0_25] : memref<258x128xf32, #tpu.memory_space<vmem>>, vector<32x128xf32>
    tpu.vector_store %arg5[%c96, %c0_25], %58 {strides = array<i32>} : memref<258x128xf32, #tpu.memory_space<vmem>>, vector<32x128xf32>,
    %c224 = arith.constant 224 : index
    %c0_26 = arith.constant 0 : index
    %60 = vector.load %arg5[%c224, %c0_26] : memref<258x128xf32, #tpu.memory_space<vmem>>, vector<32x128xf32>
    tpu.vector_store %arg5[%c224, %c0_26], %56 {strides = array<i32>} : memref<258x128xf32, #tpu.memory_space<vmem>>, vector<32x128xf32>,
    %c448 = arith.constant 448 : index
    %c0_27 = arith.constant 0 : index
    %61 = vector.load %arg2[%c448, %c0_27] : memref<512x128xbf16, #tpu.memory_space<vmem>>, vector<32x32xbf16>
    %62 = arith.truncf %56 : vector<32x128xf32> to vector<32x128xbf16>
    %cst_28 = arith.constant dense<0.000000e+00> : vector<32x128xf32>
    %63 = tpu.matmul %61, %62, %cst_28 {dimension_numbers = #tpu.dot_dimension_numbers<[1], [0], [0], [1], [0, 0, 1, 1], [], []>} : vector<32x32xbf16>, vector<32x128xbf16>, vector<32x128xf32> -> vector<32x128xf32>
    %64 = arith.mulf %63, %41 : vector<32x128xf32>
    %65 = vector.extract_strided_slice %9 {offsets = [64, 0], sizes = [32, 128], strides = [1, 1]} : vector<128x128xf32> to vector<32x128xf32>
    %66 = arith.mulf %64, %65 : vector<32x128xf32>
    %c64 = arith.constant 64 : index
    %c0_29 = arith.constant 0 : index
    %67 = vector.load %arg5[%c64, %c0_29] : memref<258x128xf32, #tpu.memory_space<vmem>>, vector<32x128xf32>
    tpu.vector_store %arg5[%c64, %c0_29], %66 {strides = array<i32>} : memref<258x128xf32, #tpu.memory_space<vmem>>, vector<32x128xf32>,
    %c192 = arith.constant 192 : index
    %c0_30 = arith.constant 0 : index
    %68 = vector.load %arg5[%c192, %c0_30] : memref<258x128xf32, #tpu.memory_space<vmem>>, vector<32x128xf32>
    tpu.vector_store %arg5[%c192, %c0_30], %64 {strides = array<i32>} : memref<258x128xf32, #tpu.memory_space<vmem>>, vector<32x128xf32>,
    %c416 = arith.constant 416 : index
    %c0_31 = arith.constant 0 : index
    %69 = vector.load %arg2[%c416, %c0_31] : memref<512x128xbf16, #tpu.memory_space<vmem>>, vector<32x32xbf16>
    %70 = arith.truncf %64 : vector<32x128xf32> to vector<32x128xbf16>
    %cst_32 = arith.constant dense<0.000000e+00> : vector<32x128xf32>
    %71 = tpu.matmul %69, %70, %cst_32 {dimension_numbers = #tpu.dot_dimension_numbers<[1], [0], [0], [1], [0, 0, 1, 1], [], []>} : vector<32x32xbf16>, vector<32x128xbf16>, vector<32x128xf32> -> vector<32x128xf32>
    %72 = arith.mulf %71, %30 : vector<32x128xf32>
    %73 = vector.extract_strided_slice %9 {offsets = [32, 0], sizes = [32, 128], strides = [1, 1]} : vector<128x128xf32> to vector<32x128xf32>
    %74 = arith.mulf %72, %73 : vector<32x128xf32>
    %c32 = arith.constant 32 : index
    %c0_33 = arith.constant 0 : index
    %75 = vector.load %arg5[%c32, %c0_33] : memref<258x128xf32, #tpu.memory_space<vmem>>, vector<32x128xf32>
    tpu.vector_store %arg5[%c32, %c0_33], %74 {strides = array<i32>} : memref<258x128xf32, #tpu.memory_space<vmem>>, vector<32x128xf32>,
    %c160 = arith.constant 160 : index
    %c0_34 = arith.constant 0 : index
    %76 = vector.load %arg5[%c160, %c0_34] : memref<258x128xf32, #tpu.memory_space<vmem>>, vector<32x128xf32>
    tpu.vector_store %arg5[%c160, %c0_34], %72 {strides = array<i32>} : memref<258x128xf32, #tpu.memory_space<vmem>>, vector<32x128xf32>,
    %c384 = arith.constant 384 : index
    %c0_35 = arith.constant 0 : index
    %77 = vector.load %arg2[%c384, %c0_35] : memref<512x128xbf16, #tpu.memory_space<vmem>>, vector<32x32xbf16>
    %78 = arith.truncf %72 : vector<32x128xf32> to vector<32x128xbf16>
    %cst_36 = arith.constant dense<0.000000e+00> : vector<32x128xf32>
    %79 = tpu.matmul %77, %78, %cst_36 {dimension_numbers = #tpu.dot_dimension_numbers<[1], [0], [0], [1], [0, 0, 1, 1], [], []>} : vector<32x32xbf16>, vector<32x128xbf16>, vector<32x128xf32> -> vector<32x128xf32>
    %80 = arith.mulf %79, %19 : vector<32x128xf32>
    %81 = vector.extract_strided_slice %9 {offsets = [0, 0], sizes = [32, 128], strides = [1, 1]} : vector<128x128xf32> to vector<32x128xf32>
    %82 = arith.mulf %80, %81 : vector<32x128xf32>
    %c0_37 = arith.constant 0 : index
    %c0_38 = arith.constant 0 : index
    %83 = vector.load %arg5[%c0_37, %c0_38] : memref<258x128xf32, #tpu.memory_space<vmem>>, vector<32x128xf32>
    tpu.vector_store %arg5[%c0_37, %c0_38], %82 {strides = array<i32>} : memref<258x128xf32, #tpu.memory_space<vmem>>, vector<32x128xf32>,
    %c128 = arith.constant 128 : index
    %c0_39 = arith.constant 0 : index
    %84 = vector.load %arg5[%c128, %c0_39] : memref<258x128xf32, #tpu.memory_space<vmem>>, vector<32x128xf32>
    tpu.vector_store %arg5[%c128, %c0_39], %80 {strides = array<i32>} : memref<258x128xf32, #tpu.memory_space<vmem>>, vector<32x128xf32>,
    %c0_40 = arith.constant 0 : index
    %c0_41 = arith.constant 0 : index
    %85 = vector.load %arg3[%c0_40, %c0_41] : memref<10x258xbf16, #tpu.memory_space<vmem>>, vector<10x258xbf16>
    %c0_42 = arith.constant 0 : index
    %c0_43 = arith.constant 0 : index
    %86 = vector.load %arg5[%c0_42, %c0_43] : memref<258x128xf32, #tpu.memory_space<vmem>>, vector<258x128xf32>
    %87 = arith.truncf %86 : vector<258x128xf32> to vector<258x128xbf16>
    %cst_44 = arith.constant dense<0.000000e+00> : vector<10x128xf32>
    %88 = tpu.matmul %85, %87, %cst_44 {dimension_numbers = #tpu.dot_dimension_numbers<[1], [0], [0], [1], [0, 0, 1, 1], [], []>} : vector<10x258xbf16>, vector<258x128xbf16>, vector<10x128xf32> -> vector<10x128xf32>
    %cst_45 = arith.constant 5.000000e-01 : f32
    %89 = vector.broadcast %cst_45 : f32 to vector<10x128xf32>
    %90 = arith.mulf %89, %88 : vector<10x128xf32>
    %91 = vector.extract_strided_slice %0 {offsets = [0, 0], sizes = [10, 128], strides = [1, 1]} : vector<11x128xf32> to vector<10x128xf32>
    %cst_46 = arith.constant 5.000000e-01 : f32
    %92 = vector.broadcast %cst_46 : f32 to vector<10x128xf32>
    %93 = arith.mulf %92, %91 : vector<10x128xf32>
    %94 = arith.addf %90, %93 : vector<10x128xf32>
    %c0_47 = arith.constant 0 : index
    %c0_48 = arith.constant 0 : index
    %95 = vector.load %arg4[%c0_47, %c0_48] : memref<10x128xf32, #tpu.memory_space<vmem>>, vector<10x128xf32>
    tpu.vector_store %arg4[%c0_47, %c0_48], %94 {strides = array<i32>} : memref<10x128xf32, #tpu.memory_space<vmem>>, vector<10x128xf32>,
    return
  }
  func.func @transform_0(%arg0: i32) -> (i32, i32) {
    %c0_i32 = arith.constant 0 : i32
    %c0_i32_0 = arith.constant 0 : i32
    return %c0_i32, %arg0 : i32, i32
  }
  func.func @transform_1(%arg0: i32) -> (i32, i32) {
    %c0_i32 = arith.constant 0 : i32
    %c0_i32_0 = arith.constant 0 : i32
    %c0_i32_1 = arith.constant 0 : i32
    return %c0_i32, %c0_i32_0 : i32, i32
  }
  func.func @transform_2(%arg0: i32) -> (i32, i32) {
    %c0_i32 = arith.constant 0 : i32
    %c0_i32_0 = arith.constant 0 : i32
    %c0_i32_1 = arith.constant 0 : i32
    return %c0_i32, %c0_i32_0 : i32, i32
  }
  func.func @transform_3(%arg0: i32) -> (i32, i32) {
    %c0_i32 = arith.constant 0 : i32
    %c0_i32_0 = arith.constant 0 : i32
    return %c0_i32, %arg0 : i32, i32
  }
}

</mosaic_0001>

<llo_original>
// kernel: tpu_custom_call.1
$region0: #{tpu_custom_call.1}
  #allocation0 [shape = 'u32[]', space=smem, size = 0x4, offset = 0x4, fixed_abs, tag = 'smem constant byte address 0x4 - core index']
  #allocation1 [shape = 'u32[144,128]{1,0:T(1,128)}', space=vmem, size = 0x12000, scoped, tag = 'internal scratch']
  #allocation2 [shape = 'f32[258,128]{1,0:T(8,128)}', space=vmem, size = 0x21000, scoped, tag = 'scratch operand']
  %s0 = inlined_call_operand.hbm [shape: f32[11,128], index: 0, kind: input, shape index: {}]
  %s1 = inlined_call_operand.hbm [shape: bf16[512,128], index: 1, kind: input, shape index: {}]
  %s2 = inlined_call_operand.hbm [shape: bf16[10,258], index: 2, kind: input, shape index: {}]
  %s3 = inlined_call_operand.hbm [shape: f32[10,128], index: 3, kind: output, shape index: {}]
  %s4 = sld [smem:[#allocation0]]
  $region34: #{tpu_custom_call.1} parent=0
    _
  %s6 = ssub.s32 1, %s4
  %s7 = scalar_select 0, %s6, %s4
  $region1: #{tpu_custom_call.1} parent=0
    #allocation3 [shape = 'u8[8192]{0}', space=vmem, size = 0x2000, scoped, tag = 'input window, operand 0, single buffered']
    #allocation4 [shape = 's32[1]{0}', space=sflag, size = 0x4, scoped, tag = 'scoped memory for tpu_custom_call.1']
    #allocation5 [shape = 's32[1]{0}', space=sflag, size = 0x4, scoped, tag = 'scoped memory for tpu_custom_call.1']
    #allocation6 [shape = 'u8[131072]{0}', space=vmem, size = 0x20000, scoped, tag = 'input window, operand 1, single buffered']
    #allocation7 [shape = 's32[1]{0}', space=sflag, size = 0x4, scoped, tag = 'scoped memory for tpu_custom_call.1']
    #allocation8 [shape = 'u8[12288]{0}', space=vmem, size = 0x3000, scoped, tag = 'input window, operand 2, single buffered']
    #allocation9 [shape = 'u8[8192]{0}', space=vmem, size = 0x2000, scoped, tag = 'output window, operand 0, single buffered']
    %8 = vsyncpa [#allocation4], 0
    %9 = vsyncpa [#allocation7], 0
    %10 = vsyncpa [#allocation5], 0
    // Predicated region
    $region2: #{tpu_custom_call.1} parent=1 // pred_check
      _
    $region3: #{tpu_custom_call.1} parent=1 // pred_check_branch
      %12 = sbr.rel (0) target = $region5
    $region4: #{tpu_custom_call.1} parent=1 // pred_region
      %s14 = ssub.s32 256, 256
      %15 = vsyncadd [#allocation4], %s14
      %s16 = sshll.u32 [#allocation3], 4
      %s17 = int_to_ptr.vmem [resolvable:$true] %s16
      %22 = dma.hbm_to_vmem [thread:$0]  %s0, 256, %s17, [#allocation4], 128, 128, 8
    $region5: #{tpu_custom_call.1} parent=1 // pred_fallthru
      _
    // Predicated region
    $region6: #{tpu_custom_call.1} parent=1 // pred_check
      _
    $region7: #{tpu_custom_call.1} parent=1 // pred_check_branch
      %24 = sbr.rel (0) target = $region9
    $region8: #{tpu_custom_call.1} parent=1 // pred_region
      %s26 = ssub.s32 4096, 4096
      %27 = vsyncadd [#allocation7], %s26
      %s28 = sshll.u32 [#allocation6], 4
      %s29 = int_to_ptr.vmem [resolvable:$true] %s28
      %34 = dma.hbm_to_vmem [thread:$0]  %s1, 4096, %s29, [#allocation7], 64, 64, 4
    $region9: #{tpu_custom_call.1} parent=1 // pred_fallthru
      _
    // Predicated region
    $region10: #{tpu_custom_call.1} parent=1 // pred_check
      _
    $region11: #{tpu_custom_call.1} parent=1 // pred_check_branch
      %36 = sbr.rel (0) target = $region13
    $region12: #{tpu_custom_call.1} parent=1 // pred_region
      %s38 = ssub.s32 384, 384
      %39 = vsyncadd [#allocation7], %s38
      %s40 = sshll.u32 [#allocation8], 4
      %s41 = int_to_ptr.vmem [resolvable:$true] %s40
      %46 = dma.hbm_to_vmem [thread:$0]  %s2, 384, %s41, [#allocation7], 192, 192, 12
    $region13: #{tpu_custom_call.1} parent=1 // pred_fallthru
      _
    // Predicated region
    $region14: #{tpu_custom_call.1} parent=1 // pred_check
      _
    $region15: #{tpu_custom_call.1} parent=1 // pred_check_branch
      %48 = sbr.rel (0) target = $region17
    $region16: #{tpu_custom_call.1} parent=1 // pred_region
      %49 = dma.done [#allocation4], 256
    $region17: #{tpu_custom_call.1} parent=1 // pred_fallthru
      _
    // Predicated region
    $region18: #{tpu_custom_call.1} parent=1 // pred_check
      _
    $region19: #{tpu_custom_call.1} parent=1 // pred_check_branch
      %51 = sbr.rel (0) target = $region21
    $region20: #{tpu_custom_call.1} parent=1 // pred_region
      %52 = dma.done [#allocation7], 4096
    $region21: #{tpu_custom_call.1} parent=1 // pred_fallthru
      _
    // Predicated region
    $region22: #{tpu_custom_call.1} parent=1 // pred_check
      _
    $region23: #{tpu_custom_call.1} parent=1 // pred_check_branch
      %54 = sbr.rel (0) target = $region25
    $region24: #{tpu_custom_call.1} parent=1 // pred_region
      %55 = dma.done [#allocation7], 384
    $region25: #{tpu_custom_call.1} parent=1 // pred_fallthru
      _
    %v57 = vld [vmem:[#allocation3] sm:$0xff]
    %v58 = vld [vmem:[#allocation3 + $0x8] sm:$0x7]
    %v59 = vpack.c.bf16 %v58, %v57
    %v60 = vld [vmem:[#allocation6] sm:$0xf]
    %v61 = vld [vmem:[#allocation6 + $0x4] sm:$0xf]
    %v62 = vld [vmem:[#allocation6 + $0x8] sm:$0xf]
    %v63 = vld [vmem:[#allocation6 + $0xc] sm:$0xf]
    %v64 = vld [vmem:[#allocation6 + $0x10] sm:$0xf]
    %v65 = vld [vmem:[#allocation6 + $0x14] sm:$0xf]
    %v66 = vld [vmem:[#allocation6 + $0x18] sm:$0xf]
    %v67 = vld [vmem:[#allocation6 + $0x1c] sm:$0xf]
    %v68 = vld [vmem:[#allocation6 + $0x20] sm:$0xf]
    %v69 = vld [vmem:[#allocation6 + $0x24] sm:$0xf]
    %v70 = vld [vmem:[#allocation6 + $0x28] sm:$0xf]
    %v71 = vld [vmem:[#allocation6 + $0x2c] sm:$0xf]
    %v72 = vld [vmem:[#allocation6 + $0x30] sm:$0xf]
    %v73 = vld [vmem:[#allocation6 + $0x34] sm:$0xf]
    %v74 = vld [vmem:[#allocation6 + $0x38] sm:$0xf]
    %v75 = vld [vmem:[#allocation6 + $0x3c] sm:$0xf]
    %v76 = vld [vmem:[#allocation6 + $0x40] sm:$0xf]
    %v77 = vld [vmem:[#allocation6 + $0x44] sm:$0xf]
    %v78 = vld [vmem:[#allocation6 + $0x48] sm:$0xf]
    %v79 = vld [vmem:[#allocation6 + $0x4c] sm:$0xf]
    %v80 = vld [vmem:[#allocation6 + $0x50] sm:$0xf]
    %v81 = vld [vmem:[#allocation6 + $0x54] sm:$0xf]
    %v82 = vld [vmem:[#allocation6 + $0x58] sm:$0xf]
    %v83 = vld [vmem:[#allocation6 + $0x5c] sm:$0xf]
    %v84 = vld [vmem:[#allocation6 + $0x60] sm:$0xf]
    %v85 = vld [vmem:[#allocation6 + $0x64] sm:$0xf]
    %v86 = vld [vmem:[#allocation6 + $0x68] sm:$0xf]
    %v87 = vld [vmem:[#allocation6 + $0x6c] sm:$0xf]
    %v88 = vld [vmem:[#allocation6 + $0x70] sm:$0xf]
    %v89 = vld [vmem:[#allocation6 + $0x74] sm:$0xf]
    %v90 = vld [vmem:[#allocation6 + $0x78] sm:$0xf]
    %v91 = vld [vmem:[#allocation6 + $0x7c] sm:$0xf]
    %v92 = vld [vmem:[#allocation6 + $0x80] sm:$0x1]
    %v126 = vunpack.c.l.b16 %v60
    %v127 = vunpack.c.l.b16 %v61
    %v128 = vunpack.c.l.b16 %v62
    %v129 = vunpack.c.l.b16 %v63
    %v130 = vunpack.c.l.b16 %v64
    %v131 = vunpack.c.l.b16 %v65
    %v132 = vunpack.c.l.b16 %v66
    %v133 = vunpack.c.l.b16 %v67
    %v134 = vunpack.c.l.b16 %v68
    %v135 = vunpack.c.l.b16 %v69
    %v136 = vunpack.c.l.b16 %v70
    %v137 = vunpack.c.l.b16 %v71
    %v138 = vunpack.c.l.b16 %v72
    %v139 = vunpack.c.l.b16 %v73
    %v140 = vunpack.c.l.b16 %v74
    %v141 = vunpack.c.l.b16 %v75
    %v142 = vunpack.c.l.b16 %v76
    %v143 = vunpack.c.l.b16 %v77
    %v144 = vunpack.c.l.b16 %v78
    %v145 = vunpack.c.l.b16 %v79
    %v146 = vunpack.c.l.b16 %v80
    %v147 = vunpack.c.l.b16 %v81
    %v148 = vunpack.c.l.b16 %v82
    %v149 = vunpack.c.l.b16 %v83
    %v150 = vunpack.c.l.b16 %v84
    %v151 = vunpack.c.l.b16 %v85
    %v152 = vunpack.c.l.b16 %v86
    %v153 = vunpack.c.l.b16 %v87
    %v154 = vunpack.c.l.b16 %v88
    %v155 = vunpack.c.l.b16 %v89
    %v156 = vunpack.c.l.b16 %v90
    %v157 = vunpack.c.l.b16 %v91
    %v158 = vunpack.c.l.b16 %v92
    %v159 = vpack.c.b16 %v127, %v126
    %v160 = vpack.c.b16 %v129, %v128
    %v161 = vpack.c.b16 %v131, %v130
    %v162 = vpack.c.b16 %v133, %v132
    %v163 = vpack.c.b16 %v135, %v134
    %v164 = vpack.c.b16 %v137, %v136
    %v165 = vpack.c.b16 %v139, %v138
    %v166 = vpack.c.b16 %v141, %v140
    %v167 = vpack.c.b16 %v143, %v142
    %v168 = vpack.c.b16 %v145, %v144
    %v169 = vpack.c.b16 %v147, %v146
    %v170 = vpack.c.b16 %v149, %v148
    %v171 = vpack.c.b16 %v151, %v150
    %v172 = vpack.c.b16 %v153, %v152
    %v173 = vpack.c.b16 %v155, %v154
    %v174 = vpack.c.b16 %v157, %v156
    %v175 = vpack.c.b16 %v158, %v158
    %vm176 = vcmask 89088
    %v178 = vsel %vm176, %v159, 0
    %v181 = vsel %vm176, %v160, 0
    %v184 = vsel %vm176, %v161, 0
    %v187 = vsel %vm176, %v162, 0
    %v190 = vsel %vm176, %v163, 0
    %v193 = vsel %vm176, %v164, 0
    %v196 = vsel %vm176, %v165, 0
    %v199 = vsel %vm176, %v166, 0
    %v202 = vsel %vm176, %v167, 0
    %v205 = vsel %vm176, %v168, 0
    %v208 = vsel %vm176, %v169, 0
    %v211 = vsel %vm176, %v170, 0
    %v214 = vsel %vm176, %v171, 0
    %v217 = vsel %vm176, %v172, 0
    %v220 = vsel %vm176, %v173, 0
    %v223 = vsel %vm176, %v174, 0
    %v226 = vsel %vm176, %v175, 0
    %vm228 = vcmask 1044480
    %vm229 = vcmask 1045504
    %v230 = vsel %vm228, 4294967295, 65535
    %v231 = vsel %vm229, %v230, 0
    %v233 = vand.u32 %v59, %v231
    %235 = vmatprep.subr.bf16.mxu0 0
    %236 = vmatpush1.bf16.msra.mxu0 %v233
    %237 = vmatprep.subr.bf16.mxu0 0
    %238 = vmatpush1.bf16.msra.mxu0 0
    %239 = vmatprep.subr.bf16.mxu0 0
    %240 = vmatpush1.bf16.msra.mxu0 0
    %241 = vmatprep.subr.bf16.mxu0 0
    %242 = vmatpush1.bf16.msra.mxu0 0
    %243 = vmatprep.subr.bf16.mxu0 0
    %244 = vmatpush1.bf16.msra.mxu0 0
    %245 = vmatprep.subr.bf16.mxu0 0
    %246 = vmatpush1.bf16.msra.mxu0 0
    %247 = vmatprep.subr.bf16.mxu0 0
    %248 = vmatpush1.bf16.msra.mxu0 0
    %249 = vmatprep.subr.bf16.mxu0 0
    %250 = vmatpush1.bf16.msra.mxu0 0
    %251 = vmatprep.subr.bf16.mxu0 0
    %252 = vmatpush1.bf16.msra.mxu0 0
    %253 = vmatprep.subr.bf16.mxu0 0
    %254 = vmatpush1.bf16.msra.mxu0 0
    %255 = vmatprep.subr.bf16.mxu0 0
    %256 = vmatpush1.bf16.msra.mxu0 0
    %257 = vmatprep.subr.bf16.mxu0 0
    %258 = vmatpush1.bf16.msra.mxu0 0
    %259 = vmatprep.subr.bf16.mxu0 0
    %260 = vmatpush1.bf16.msra.mxu0 0
    %261 = vmatprep.subr.bf16.mxu0 0
    %262 = vmatpush1.bf16.msra.mxu0 0
    %263 = vmatprep.subr.bf16.mxu0 0
    %264 = vmatpush1.bf16.msra.mxu0 0
    %265 = vmatprep.subr.bf16.mxu0 0
    %266 = vmatpush1.bf16.msra.mxu0 0
    %267 = vmatprep.mubr.bf16.mxu0 0
    %268 = vmatmul.mubr.bf16.gmra.mrb[0].mxu0 %v178
    %v269 = vpop.f32.mrb[0].mxu0
    %v270 = vadd.f32 0.0, %v269
    %v271 = vpop.f32.mrb[0].mxu0
    %v272 = vpop.f32.mrb[0].mxu0
    %v273 = vadd.f32 0.0, %v272
    %v274 = vpop.f32.mrb[0].mxu0
    %275 = vmatprep.mubr.bf16.mxu0 0
    %276 = vmatmul.mubr.bf16.gmra.mrb[0].mxu0 %v181
    %v277 = vpop.f32.mrb[0].mxu0
    %v278 = vadd.f32 0.0, %v277
    %v279 = vpop.f32.mrb[0].mxu0
    %v280 = vpop.f32.mrb[0].mxu0
    %v281 = vadd.f32 0.0, %v280
    %v282 = vpop.f32.mrb[0].mxu0
    %283 = vmatprep.mubr.bf16.mxu0 0
    %284 = vmatmul.mubr.bf16.gmra.mrb[0].mxu0 %v184
    %v285 = vpop.f32.mrb[0].mxu0
    %v286 = vadd.f32 0.0, %v285
    %v287 = vpop.f32.mrb[0].mxu0
    %v288 = vpop.f32.mrb[0].mxu0
    %v289 = vadd.f32 0.0, %v288
    %v290 = vpop.f32.mrb[0].mxu0
    %291 = vmatprep.mubr.bf16.mxu0 0
    %292 = vmatmul.mubr.bf16.gmra.mrb[0].mxu0 %v187
    %v293 = vpop.f32.mrb[0].mxu0
    %v294 = vadd.f32 0.0, %v293
    %v295 = vpop.f32.mrb[0].mxu0
    %v296 = vpop.f32.mrb[0].mxu0
    %v297 = vadd.f32 0.0, %v296
    %v298 = vpop.f32.mrb[0].mxu0
    %299 = vmatprep.mubr.bf16.mxu0 0
    %300 = vmatmul.mubr.bf16.gmra.mrb[0].mxu0 %v190
    %v301 = vpop.f32.mrb[0].mxu0
    %v302 = vadd.f32 0.0, %v301
    %v303 = vpop.f32.mrb[0].mxu0
    %v304 = vpop.f32.mrb[0].mxu0
    %v305 = vadd.f32 0.0, %v304
    %v306 = vpop.f32.mrb[0].mxu0
    %307 = vmatprep.mubr.bf16.mxu0 0
    %308 = vmatmul.mubr.bf16.gmra.mrb[0].mxu0 %v193
    %v309 = vpop.f32.mrb[0].mxu0
    %v310 = vadd.f32 0.0, %v309
    %v311 = vpop.f32.mrb[0].mxu0
    %v312 = vpop.f32.mrb[0].mxu0
    %v313 = vadd.f32 0.0, %v312
    %v314 = vpop.f32.mrb[0].mxu0
    %315 = vmatprep.mubr.bf16.mxu0 0
    %316 = vmatmul.mubr.bf16.gmra.mrb[0].mxu0 %v196
    %v317 = vpop.f32.mrb[0].mxu0
    %v318 = vadd.f32 0.0, %v317
    %v319 = vpop.f32.mrb[0].mxu0
    %v320 = vpop.f32.mrb[0].mxu0
    %v321 = vadd.f32 0.0, %v320
    %v322 = vpop.f32.mrb[0].mxu0
    %323 = vmatprep.mubr.bf16.mxu0 0
    %324 = vmatmul.mubr.bf16.gmra.mrb[0].mxu0 %v199
    %v325 = vpop.f32.mrb[0].mxu0
    %v326 = vadd.f32 0.0, %v325
    %v327 = vpop.f32.mrb[0].mxu0
    %v328 = vpop.f32.mrb[0].mxu0
    %v329 = vadd.f32 0.0, %v328
    %v330 = vpop.f32.mrb[0].mxu0
    %331 = vmatprep.mubr.bf16.mxu0 0
    %332 = vmatmul.mubr.bf16.gmra.mrb[0].mxu0 %v202
    %v333 = vpop.f32.mrb[0].mxu0
    %v334 = vadd.f32 0.0, %v333
    %v335 = vpop.f32.mrb[0].mxu0
    %v336 = vpop.f32.mrb[0].mxu0
    %v337 = vadd.f32 0.0, %v336
    %v338 = vpop.f32.mrb[0].mxu0
    %339 = vmatprep.mubr.bf16.mxu0 0
    %340 = vmatmul.mubr.bf16.gmra.mrb[0].mxu0 %v205
    %v341 = vpop.f32.mrb[0].mxu0
    %v342 = vadd.f32 0.0, %v341
    %v343 = vpop.f32.mrb[0].mxu0
    %v344 = vpop.f32.mrb[0].mxu0
    %v345 = vadd.f32 0.0, %v344
    %v346 = vpop.f32.mrb[0].mxu0
    %347 = vmatprep.mubr.bf16.mxu0 0
    %348 = vmatmul.mubr.bf16.gmra.mrb[0].mxu0 %v208
    %v349 = vpop.f32.mrb[0].mxu0
    %v350 = vadd.f32 0.0, %v349
    %v351 = vpop.f32.mrb[0].mxu0
    %v352 = vpop.f32.mrb[0].mxu0
    %v353 = vadd.f32 0.0, %v352
    %v354 = vpop.f32.mrb[0].mxu0
    %355 = vmatprep.mubr.bf16.mxu0 0
    %356 = vmatmul.mubr.bf16.gmra.mrb[0].mxu0 %v211
    %v357 = vpop.f32.mrb[0].mxu0
    %v358 = vadd.f32 0.0, %v357
    %v359 = vpop.f32.mrb[0].mxu0
    %v360 = vpop.f32.mrb[0].mxu0
    %v361 = vadd.f32 0.0, %v360
    %v362 = vpop.f32.mrb[0].mxu0
    %363 = vmatprep.mubr.bf16.mxu0 0
    %364 = vmatmul.mubr.bf16.gmra.mrb[0].mxu0 %v214
    %v365 = vpop.f32.mrb[0].mxu0
    %v366 = vadd.f32 0.0, %v365
    %v367 = vpop.f32.mrb[0].mxu0
    %v368 = vpop.f32.mrb[0].mxu0
    %v369 = vadd.f32 0.0, %v368
    %v370 = vpop.f32.mrb[0].mxu0
    %371 = vmatprep.mubr.bf16.mxu0 0
    %372 = vmatmul.mubr.bf16.gmra.mrb[0].mxu0 %v217
    %v373 = vpop.f32.mrb[0].mxu0
    %v374 = vadd.f32 0.0, %v373
    %v375 = vpop.f32.mrb[0].mxu0
    %v376 = vpop.f32.mrb[0].mxu0
    %v377 = vadd.f32 0.0, %v376
    %v378 = vpop.f32.mrb[0].mxu0
    %379 = vmatprep.mubr.bf16.mxu0 0
    %380 = vmatmul.mubr.bf16.gmra.mrb[0].mxu0 %v220
    %v381 = vpop.f32.mrb[0].mxu0
    %v382 = vadd.f32 0.0, %v381
    %v383 = vpop.f32.mrb[0].mxu0
    %v384 = vpop.f32.mrb[0].mxu0
    %v385 = vadd.f32 0.0, %v384
    %v386 = vpop.f32.mrb[0].mxu0
    %387 = vmatprep.mubr.bf16.mxu0 0
    %388 = vmatmul.mubr.bf16.gmra.mrb[0].mxu0 %v223
    %v389 = vpop.f32.mrb[0].mxu0
    %v390 = vadd.f32 0.0, %v389
    %v391 = vpop.f32.mrb[0].mxu0
    %v392 = vpop.f32.mrb[0].mxu0
    %v393 = vadd.f32 0.0, %v392
    %v394 = vpop.f32.mrb[0].mxu0
    %395 = vmatprep.mubr.bf16.mxu0 0
    %396 = vmatmul.mubr.bf16.gmra.mrb[0].mxu0 %v226
    %v397 = vpop.f32.mrb[0].mxu0
    %v398 = vadd.f32 0.0, %v397
    %v399 = vpop.f32.mrb[0].mxu0
    %v400 = vpop.f32.mrb[0].mxu0
    %v401 = vpop.f32.mrb[0].mxu0
    %402 = vdwg.mxu0
    %v403 = vmul.f32 %v270, %v270
    %v404 = vmul.f32 %v273, %v273
    %v405 = vmul.f32 %v278, %v278
    %v406 = vmul.f32 %v281, %v281
    %v407 = vmul.f32 %v286, %v286
    %v408 = vmul.f32 %v289, %v289
    %v409 = vmul.f32 %v294, %v294
    %v410 = vmul.f32 %v297, %v297
    %v411 = vmul.f32 %v302, %v302
    %v412 = vmul.f32 %v305, %v305
    %v413 = vmul.f32 %v310, %v310
    %v414 = vmul.f32 %v313, %v313
    %v415 = vmul.f32 %v318, %v318
    %v416 = vmul.f32 %v321, %v321
    %v417 = vmul.f32 %v326, %v326
    %v418 = vmul.f32 %v329, %v329
    %v419 = vadd.f32 %v403, %v334
    %v420 = vadd.f32 %v404, %v337
    %v421 = vadd.f32 %v405, %v342
    %v422 = vadd.f32 %v406, %v345
    %v423 = vadd.f32 %v407, %v350
    %v424 = vadd.f32 %v408, %v353
    %v425 = vadd.f32 %v409, %v358
    %v426 = vadd.f32 %v410, %v361
    %v427 = vadd.f32 %v411, %v366
    %v428 = vadd.f32 %v412, %v369
    %v429 = vadd.f32 %v413, %v374
    %v430 = vadd.f32 %v414, %v377
    %v431 = vadd.f32 %v415, %v382
    %v432 = vadd.f32 %v416, %v385
    %v433 = vadd.f32 %v417, %v390
    %v434 = vadd.f32 %v418, %v393
    %v435 = vadd.f32 %v270, %v270
    %v436 = vadd.f32 %v273, %v273
    %v437 = vadd.f32 %v278, %v278
    %v438 = vadd.f32 %v281, %v281
    %v439 = vadd.f32 %v286, %v286
    %v440 = vadd.f32 %v289, %v289
    %v441 = vadd.f32 %v294, %v294
    %v442 = vadd.f32 %v297, %v297
    %v443 = vadd.f32 %v302, %v302
    %v444 = vadd.f32 %v305, %v305
    %v445 = vadd.f32 %v310, %v310
    %v446 = vadd.f32 %v313, %v313
    %v447 = vadd.f32 %v318, %v318
    %v448 = vadd.f32 %v321, %v321
    %v449 = vadd.f32 %v326, %v326
    %v450 = vadd.f32 %v329, %v329
    %v451 = vadd.f32 %v398, %v398
    %452 = vst [vmem:[#allocation2 + $0x100] sm:$0x1] %v451
    %453 = vst [vmem:[#allocation2 + $0x101] sm:$0x1] 1.0
    %vm454 = vcmp.gt.f32.partialorder %v419, 0.0
    %vm455 = vcmp.gt.f32.partialorder %v420, 0.0
    %vm456 = vcmp.gt.f32.partialorder %v421, 0.0
    %vm457 = vcmp.gt.f32.partialorder %v422, 0.0
    %v458 = vsel %vm454, 1.0, 0.2
    %v459 = vsel %vm455, 1.0, 0.2
    %v460 = vsel %vm456, 1.0, 0.2
    %v461 = vsel %vm457, 1.0, 0.2
    %v462 = vmul.f32 %v419, %v458
    %v463 = vmul.f32 %v420, %v459
    %v464 = vmul.f32 %v421, %v460
    %v465 = vmul.f32 %v422, %v461
    %v466 = vld [vmem:[#allocation6 + $0x90] sm:$0xf]
    %v467 = vld [vmem:[#allocation6 + $0x94] sm:$0xf]
    %v468 = vld [vmem:[#allocation6 + $0x98] sm:$0xf]
    %v469 = vld [vmem:[#allocation6 + $0x9c] sm:$0xf]
    %v470 = vpack.c.bf16 %v463, %v462
    %v471 = vpack.c.bf16 %v465, %v464
    %v476 = vunpack.c.l.b16 %v466
    %v477 = vunpack.c.l.b16 %v467
    %v478 = vunpack.c.l.b16 %v468
    %v479 = vunpack.c.l.b16 %v469
    %v480 = vpack.c.b16 %v477, %v476
    %v481 = vpack.c.b16 %v479, %v478
    %vm482 = vcmask 261120
    %v484 = vsel %vm482, %v480, 0
    %v487 = vsel %vm482, %v481, 0
    %489 = vmatprep.subr.bf16.mxu0 0
    %490 = vmatpush1.bf16.msra.mxu0 %v470
    %491 = vmatprep.subr.bf16.mxu0 0
    %492 = vmatpush1.bf16.msra.mxu0 %v471
    %493 = vmatprep.subr.bf16.mxu0 0
    %494 = vmatpush1.bf16.msra.mxu0 0
    %495 = vmatprep.subr.bf16.mxu0 0
    %496 = vmatpush1.bf16.msra.mxu0 0
    %497 = vmatprep.subr.bf16.mxu0 0
    %498 = vmatpush1.bf16.msra.mxu0 0
    %499 = vmatprep.subr.bf16.mxu0 0
    %500 = vmatpush1.bf16.msra.mxu0 0
    %501 = vmatprep.subr.bf16.mxu0 0
    %502 = vmatpush1.bf16.msra.mxu0 0
    %503 = vmatprep.subr.bf16.mxu0 0
    %504 = vmatpush1.bf16.msra.mxu0 0
    %505 = vmatprep.subr.bf16.mxu0 0
    %506 = vmatpush1.bf16.msra.mxu0 0
    %507 = vmatprep.subr.bf16.mxu0 0
    %508 = vmatpush1.bf16.msra.mxu0 0
    %509 = vmatprep.subr.bf16.mxu0 0
    %510 = vmatpush1.bf16.msra.mxu0 0
    %511 = vmatprep.subr.bf16.mxu0 0
    %512 = vmatpush1.bf16.msra.mxu0 0
    %513 = vmatprep.subr.bf16.mxu0 0
    %514 = vmatpush1.bf16.msra.mxu0 0
    %515 = vmatprep.subr.bf16.mxu0 0
    %516 = vmatpush1.bf16.msra.mxu0 0
    %517 = vmatprep.subr.bf16.mxu0 0
    %518 = vmatpush1.bf16.msra.mxu0 0
    %519 = vmatprep.subr.bf16.mxu0 0
    %520 = vmatpush1.bf16.msra.mxu0 0
    %521 = vmatprep.mubr.bf16.mxu0 0
    %522 = vmatmul.mubr.bf16.gmra.mrb[0].mxu0 %v484
    %v523 = vpop.f32.mrb[0].mxu0
    %v524 = vadd.f32 0.0, %v523
    %v525 = vpop.f32.mrb[0].mxu0
    %v526 = vpop.f32.mrb[0].mxu0
    %v527 = vadd.f32 0.0, %v526
    %v528 = vpop.f32.mrb[0].mxu0
    %529 = vmatprep.mubr.bf16.mxu0 0
    %530 = vmatmul.mubr.bf16.gmra.mrb[0].mxu0 %v487
    %v531 = vpop.f32.mrb[0].mxu0
    %v532 = vadd.f32 0.0, %v531
    %v533 = vpop.f32.mrb[0].mxu0
    %v534 = vpop.f32.mrb[0].mxu0
    %v535 = vadd.f32 0.0, %v534
    %v536 = vpop.f32.mrb[0].mxu0
    %537 = vdwg.mxu0
    %v538 = vadd.f32 %v423, %v524
    %v539 = vadd.f32 %v424, %v527
    %v540 = vadd.f32 %v425, %v532
    %v541 = vadd.f32 %v426, %v535
    %vm542 = vcmp.gt.f32.partialorder %v538, 0.0
    %vm543 = vcmp.gt.f32.partialorder %v539, 0.0
    %vm544 = vcmp.gt.f32.partialorder %v540, 0.0
    %vm545 = vcmp.gt.f32.partialorder %v541, 0.0
    %v546 = vsel %vm542, 1.0, 0.2
    %v547 = vsel %vm543, 1.0, 0.2
    %v548 = vsel %vm544, 1.0, 0.2
    %v549 = vsel %vm545, 1.0, 0.2
    %v550 = vmul.f32 %v538, %v546
    %v551 = vmul.f32 %v539, %v547
    %v552 = vmul.f32 %v540, %v548
    %v553 = vmul.f32 %v541, %v549
    %v554 = vld [vmem:[#allocation6 + $0xa0] sm:$0xf]
    %v555 = vld [vmem:[#allocation6 + $0xa4] sm:$0xf]
    %v556 = vld [vmem:[#allocation6 + $0xa8] sm:$0xf]
    %v557 = vld [vmem:[#allocation6 + $0xac] sm:$0xf]
    %v558 = vpack.c.bf16 %v551, %v550
    %v559 = vpack.c.bf16 %v553, %v552
    %v564 = vunpack.c.l.b16 %v554
    %v565 = vunpack.c.l.b16 %v555
    %v566 = vunpack.c.l.b16 %v556
    %v567 = vunpack.c.l.b16 %v557
    %v568 = vpack.c.b16 %v565, %v564
    %v569 = vpack.c.b16 %v567, %v566
    %v571 = vsel %vm482, %v568, 0
    %v574 = vsel %vm482, %v569, 0
    %576 = vmatprep.subr.bf16.mxu0 0
    %577 = vmatpush1.bf16.msra.mxu0 %v558
    %578 = vmatprep.subr.bf16.mxu0 0
    %579 = vmatpush1.bf16.msra.mxu0 %v559
    %580 = vmatprep.subr.bf16.mxu0 0
    %581 = vmatpush1.bf16.msra.mxu0 0
    %582 = vmatprep.subr.bf16.mxu0 0
    %583 = vmatpush1.bf16.msra.mxu0 0
    %584 = vmatprep.subr.bf16.mxu0 0
    %585 = vmatpush1.bf16.msra.mxu0 0
    %586 = vmatprep.subr.bf16.mxu0 0
    %587 = vmatpush1.bf16.msra.mxu0 0
    %588 = vmatprep.subr.bf16.mxu0 0
    %589 = vmatpush1.bf16.msra.mxu0 0
    %590 = vmatprep.subr.bf16.mxu0 0
    %591 = vmatpush1.bf16.msra.mxu0 0
    %592 = vmatprep.subr.bf16.mxu0 0
    %593 = vmatpush1.bf16.msra.mxu0 0
    %594 = vmatprep.subr.bf16.mxu0 0
    %595 = vmatpush1.bf16.msra.mxu0 0
    %596 = vmatprep.subr.bf16.mxu0 0
    %597 = vmatpush1.bf16.msra.mxu0 0
    %598 = vmatprep.subr.bf16.mxu0 0
    %599 = vmatpush1.bf16.msra.mxu0 0
    %600 = vmatprep.subr.bf16.mxu0 0
    %601 = vmatpush1.bf16.msra.mxu0 0
    %602 = vmatprep.subr.bf16.mxu0 0
    %603 = vmatpush1.bf16.msra.mxu0 0
    %604 = vmatprep.subr.bf16.mxu0 0
    %605 = vmatpush1.bf16.msra.mxu0 0
    %606 = vmatprep.subr.bf16.mxu0 0
    %607 = vmatpush1.bf16.msra.mxu0 0
    %608 = vmatprep.mubr.bf16.mxu0 0
    %609 = vmatmul.mubr.bf16.gmra.mrb[0].mxu0 %v571
    %v610 = vpop.f32.mrb[0].mxu0
    %v611 = vadd.f32 0.0, %v610
    %v612 = vpop.f32.mrb[0].mxu0
    %v613 = vpop.f32.mrb[0].mxu0
    %v614 = vadd.f32 0.0, %v613
    %v615 = vpop.f32.mrb[0].mxu0
    %616 = vmatprep.mubr.bf16.mxu0 0
    %617 = vmatmul.mubr.bf16.gmra.mrb[0].mxu0 %v574
    %v618 = vpop.f32.mrb[0].mxu0
    %v619 = vadd.f32 0.0, %v618
    %v620 = vpop.f32.mrb[0].mxu0
    %v621 = vpop.f32.mrb[0].mxu0
    %v622 = vadd.f32 0.0, %v621
    %v623 = vpop.f32.mrb[0].mxu0
    %624 = vdwg.mxu0
    %v625 = vadd.f32 %v427, %v611
    %v626 = vadd.f32 %v428, %v614
    %v627 = vadd.f32 %v429, %v619
    %v628 = vadd.f32 %v430, %v622
    %vm629 = vcmp.gt.f32.partialorder %v625, 0.0
    %vm630 = vcmp.gt.f32.partialorder %v626, 0.0
    %vm631 = vcmp.gt.f32.partialorder %v627, 0.0
    %vm632 = vcmp.gt.f32.partialorder %v628, 0.0
    %v633 = vsel %vm629, 1.0, 0.2
    %v634 = vsel %vm630, 1.0, 0.2
    %v635 = vsel %vm631, 1.0, 0.2
    %v636 = vsel %vm632, 1.0, 0.2
    %v637 = vmul.f32 %v625, %v633
    %v638 = vmul.f32 %v626, %v634
    %v639 = vmul.f32 %v627, %v635
    %v640 = vmul.f32 %v628, %v636
    %v641 = vld [vmem:[#allocation6 + $0xb0] sm:$0xf]
    %v642 = vld [vmem:[#allocation6 + $0xb4] sm:$0xf]
    %v643 = vld [vmem:[#allocation6 + $0xb8] sm:$0xf]
    %v644 = vld [vmem:[#allocation6 + $0xbc] sm:$0xf]
    %v645 = vpack.c.bf16 %v638, %v637
    %v646 = vpack.c.bf16 %v640, %v639
    %v651 = vunpack.c.l.b16 %v641
    %v652 = vunpack.c.l.b16 %v642
    %v653 = vunpack.c.l.b16 %v643
    %v654 = vunpack.c.l.b16 %v644
    %v655 = vpack.c.b16 %v652, %v651
    %v656 = vpack.c.b16 %v654, %v653
    %v658 = vsel %vm482, %v655, 0
    %v661 = vsel %vm482, %v656, 0
    %663 = vmatprep.subr.bf16.mxu0 0
    %664 = vmatpush1.bf16.msra.mxu0 %v645
    %665 = vmatprep.subr.bf16.mxu0 0
    %666 = vmatpush1.bf16.msra.mxu0 %v646
    %667 = vmatprep.subr.bf16.mxu0 0
    %668 = vmatpush1.bf16.msra.mxu0 0
    %669 = vmatprep.subr.bf16.mxu0 0
    %670 = vmatpush1.bf16.msra.mxu0 0
    %671 = vmatprep.subr.bf16.mxu0 0
    %672 = vmatpush1.bf16.msra.mxu0 0
    %673 = vmatprep.subr.bf16.mxu0 0
    %674 = vmatpush1.bf16.msra.mxu0 0
    %675 = vmatprep.subr.bf16.mxu0 0
    %676 = vmatpush1.bf16.msra.mxu0 0
    %677 = vmatprep.subr.bf16.mxu0 0
    %678 = vmatpush1.bf16.msra.mxu0 0
    %679 = vmatprep.subr.bf16.mxu0 0
    %680 = vmatpush1.bf16.msra.mxu0 0
    %681 = vmatprep.subr.bf16.mxu0 0
    %682 = vmatpush1.bf16.msra.mxu0 0
    %683 = vmatprep.subr.bf16.mxu0 0
    %684 = vmatpush1.bf16.msra.mxu0 0
    %685 = vmatprep.subr.bf16.mxu0 0
    %686 = vmatpush1.bf16.msra.mxu0 0
    %687 = vmatprep.subr.bf16.mxu0 0
    %688 = vmatpush1.bf16.msra.mxu0 0
    %689 = vmatprep.subr.bf16.mxu0 0
    %690 = vmatpush1.bf16.msra.mxu0 0
    %691 = vmatprep.subr.bf16.mxu0 0
    %692 = vmatpush1.bf16.msra.mxu0 0
    %693 = vmatprep.subr.bf16.mxu0 0
    %694 = vmatpush1.bf16.msra.mxu0 0
    %695 = vmatprep.mubr.bf16.mxu0 0
    %696 = vmatmul.mubr.bf16.gmra.mrb[0].mxu0 %v658
    %v697 = vpop.f32.mrb[0].mxu0
    %v698 = vadd.f32 0.0, %v697
    %v699 = vpop.f32.mrb[0].mxu0
    %v700 = vpop.f32.mrb[0].mxu0
    %v701 = vadd.f32 0.0, %v700
    %v702 = vpop.f32.mrb[0].mxu0
    %703 = vmatprep.mubr.bf16.mxu0 0
    %704 = vmatmul.mubr.bf16.gmra.mrb[0].mxu0 %v661
    %v705 = vpop.f32.mrb[0].mxu0
    %v706 = vadd.f32 0.0, %v705
    %v707 = vpop.f32.mrb[0].mxu0
    %v708 = vpop.f32.mrb[0].mxu0
    %v709 = vadd.f32 0.0, %v708
    %v710 = vpop.f32.mrb[0].mxu0
    %711 = vdwg.mxu0
    %v712 = vadd.f32 %v431, %v698
    %v713 = vadd.f32 %v432, %v701
    %v714 = vadd.f32 %v433, %v706
    %v715 = vadd.f32 %v434, %v709
    %vm716 = vcmp.gt.f32.partialorder %v712, 0.0
    %vm717 = vcmp.gt.f32.partialorder %v713, 0.0
    %vm718 = vcmp.gt.f32.partialorder %v714, 0.0
    %vm719 = vcmp.gt.f32.partialorder %v715, 0.0
    %v720 = vsel %vm716, 1.0, 0.2
    %v721 = vsel %vm717, 1.0, 0.2
    %v722 = vsel %vm718, 1.0, 0.2
    %v723 = vsel %vm719, 1.0, 0.2
    %v724 = vld [vmem:[#allocation6 + $0xf0] sm:$0xf]
    %v725 = vld [vmem:[#allocation6 + $0xf4] sm:$0xf]
    %v726 = vld [vmem:[#allocation6 + $0xf8] sm:$0xf]
    %v727 = vld [vmem:[#allocation6 + $0xfc] sm:$0xf]
    %v728 = vunpack.c.l.bf16 %v724
    %v729 = vunpack.c.l.bf16 %v725
    %v730 = vunpack.c.l.bf16 %v726
    %v731 = vunpack.c.l.bf16 %v727
    %733 = vset.pattern.permute.xlu0 0
    %734 = vperm.xlu0 %733, %v728
    %v735 = vpop.permute.xlu0 %734
    %738 = vset.pattern.permute.xlu0 0
    %739 = vperm.xlu0 %738, %v729
    %v740 = vpop.permute.xlu0 %739
    %743 = vset.pattern.permute.xlu0 0
    %744 = vperm.xlu0 %743, %v730
    %v745 = vpop.permute.xlu0 %744
    %748 = vset.pattern.permute.xlu0 0
    %749 = vperm.xlu0 %748, %v731
    %v750 = vpop.permute.xlu0 %749
    %v752 = vmul.f32 %v735, %v720
    %v753 = vmul.f32 %v740, %v721
    %v754 = vmul.f32 %v745, %v722
    %v755 = vmul.f32 %v750, %v723
    %v756 = vmul.f32 %v752, %v447
    %v757 = vmul.f32 %v753, %v448
    %v758 = vmul.f32 %v754, %v449
    %v759 = vmul.f32 %v755, %v450
    %760 = vst [vmem:[#allocation2 + $0x60] sm:$0xff] %v756
    %761 = vst [vmem:[#allocation2 + $0x68] sm:$0xff] %v757
    %762 = vst [vmem:[#allocation2 + $0x70] sm:$0xff] %v758
    %763 = vst [vmem:[#allocation2 + $0x78] sm:$0xff] %v759
    %764 = vst [vmem:[#allocation2 + $0xe0] sm:$0xff] %v752
    %765 = vst [vmem:[#allocation2 + $0xe8] sm:$0xff] %v753
    %766 = vst [vmem:[#allocation2 + $0xf0] sm:$0xff] %v754
    %767 = vst [vmem:[#allocation2 + $0xf8] sm:$0xff] %v755
    %v768 = vld [vmem:[#allocation6 + $0xe0] sm:$0xf]
    %v769 = vld [vmem:[#allocation6 + $0xe4] sm:$0xf]
    %v770 = vld [vmem:[#allocation6 + $0xe8] sm:$0xf]
    %v771 = vld [vmem:[#allocation6 + $0xec] sm:$0xf]
    %v772 = vpack.c.bf16 %v753, %v752
    %v773 = vpack.c.bf16 %v755, %v754
    %v778 = vunpack.c.l.b16 %v768
    %v779 = vunpack.c.l.b16 %v769
    %v780 = vunpack.c.l.b16 %v770
    %v781 = vunpack.c.l.b16 %v771
    %v782 = vpack.c.b16 %v779, %v778
    %v783 = vpack.c.b16 %v781, %v780
    %v785 = vsel %vm482, %v782, 0
    %v788 = vsel %vm482, %v783, 0
    %790 = vmatprep.subr.bf16.mxu0 0
    %791 = vmatpush1.bf16.msra.mxu0 %v772
    %792 = vmatprep.subr.bf16.mxu0 0
    %793 = vmatpush1.bf16.msra.mxu0 %v773
    %794 = vmatprep.subr.bf16.mxu0 0
    %795 = vmatpush1.bf16.msra.mxu0 0
    %796 = vmatprep.subr.bf16.mxu0 0
    %797 = vmatpush1.bf16.msra.mxu0 0
    %798 = vmatprep.subr.bf16.mxu0 0
    %799 = vmatpush1.bf16.msra.mxu0 0
    %800 = vmatprep.subr.bf16.mxu0 0
    %801 = vmatpush1.bf16.msra.mxu0 0
    %802 = vmatprep.subr.bf16.mxu0 0
    %803 = vmatpush1.bf16.msra.mxu0 0
    %804 = vmatprep.subr.bf16.mxu0 0
    %805 = vmatpush1.bf16.msra.mxu0 0
    %806 = vmatprep.subr.bf16.mxu0 0
    %807 = vmatpush1.bf16.msra.mxu0 0
    %808 = vmatprep.subr.bf16.mxu0 0
    %809 = vmatpush1.bf16.msra.mxu0 0
    %810 = vmatprep.subr.bf16.mxu0 0
    %811 = vmatpush1.bf16.msra.mxu0 0
    %812 = vmatprep.subr.bf16.mxu0 0
    %813 = vmatpush1.bf16.msra.mxu0 0
    %814 = vmatprep.subr.bf16.mxu0 0
    %815 = vmatpush1.bf16.msra.mxu0 0
    %816 = vmatprep.subr.bf16.mxu0 0
    %817 = vmatpush1.bf16.msra.mxu0 0
    %818 = vmatprep.subr.bf16.mxu0 0
    %819 = vmatpush1.bf16.msra.mxu0 0
    %820 = vmatprep.subr.bf16.mxu0 0
    %821 = vmatpush1.bf16.msra.mxu0 0
    %822 = vmatprep.mubr.bf16.mxu0 0
    %823 = vmatmul.mubr.bf16.gmra.mrb[0].mxu0 %v785
    %v824 = vpop.f32.mrb[0].mxu0
    %v825 = vadd.f32 0.0, %v824
    %v826 = vpop.f32.mrb[0].mxu0
    %v827 = vpop.f32.mrb[0].mxu0
    %v828 = vadd.f32 0.0, %v827
    %v829 = vpop.f32.mrb[0].mxu0
    %830 = vmatprep.mubr.bf16.mxu0 0
    %831 = vmatmul.mubr.bf16.gmra.mrb[0].mxu0 %v788
    %v832 = vpop.f32.mrb[0].mxu0
    %v833 = vadd.f32 0.0, %v832
    %v834 = vpop.f32.mrb[0].mxu0
    %v835 = vpop.f32.mrb[0].mxu0
    %v836 = vadd.f32 0.0, %v835
    %v837 = vpop.f32.mrb[0].mxu0
    %838 = vdwg.mxu0
    %v839 = vmul.f32 %v825, %v633
    %v840 = vmul.f32 %v828, %v634
    %v841 = vmul.f32 %v833, %v635
    %v842 = vmul.f32 %v836, %v636
    %v843 = vmul.f32 %v839, %v443
    %v844 = vmul.f32 %v840, %v444
    %v845 = vmul.f32 %v841, %v445
    %v846 = vmul.f32 %v842, %v446
    %847 = vst [vmem:[#allocation2 + $0x40] sm:$0xff] %v843
    %848 = vst [vmem:[#allocation2 + $0x48] sm:$0xff] %v844
    %849 = vst [vmem:[#allocation2 + $0x50] sm:$0xff] %v845
    %850 = vst [vmem:[#allocation2 + $0x58] sm:$0xff] %v846
    %851 = vst [vmem:[#allocation2 + $0xc0] sm:$0xff] %v839
    %852 = vst [vmem:[#allocation2 + $0xc8] sm:$0xff] %v840
    %853 = vst [vmem:[#allocation2 + $0xd0] sm:$0xff] %v841
    %854 = vst [vmem:[#allocation2 + $0xd8] sm:$0xff] %v842
    %v855 = vld [vmem:[#allocation6 + $0xd0] sm:$0xf]
    %v856 = vld [vmem:[#allocation6 + $0xd4] sm:$0xf]
    %v857 = vld [vmem:[#allocation6 + $0xd8] sm:$0xf]
    %v858 = vld [vmem:[#allocation6 + $0xdc] sm:$0xf]
    %v859 = vpack.c.bf16 %v840, %v839
    %v860 = vpack.c.bf16 %v842, %v841
    %v865 = vunpack.c.l.b16 %v855
    %v866 = vunpack.c.l.b16 %v856
    %v867 = vunpack.c.l.b16 %v857
    %v868 = vunpack.c.l.b16 %v858
    %v869 = vpack.c.b16 %v866, %v865
    %v870 = vpack.c.b16 %v868, %v867
    %v872 = vsel %vm482, %v869, 0
    %v875 = vsel %vm482, %v870, 0
    %877 = vmatprep.subr.bf16.mxu0 0
    %878 = vmatpush1.bf16.msra.mxu0 %v859
    %879 = vmatprep.subr.bf16.mxu0 0
    %880 = vmatpush1.bf16.msra.mxu0 %v860
    %881 = vmatprep.subr.bf16.mxu0 0
    %882 = vmatpush1.bf16.msra.mxu0 0
    %883 = vmatprep.subr.bf16.mxu0 0
    %884 = vmatpush1.bf16.msra.mxu0 0
    %885 = vmatprep.subr.bf16.mxu0 0
    %886 = vmatpush1.bf16.msra.mxu0 0
    %887 = vmatprep.subr.bf16.mxu0 0
    %888 = vmatpush1.bf16.msra.mxu0 0
    %889 = vmatprep.subr.bf16.mxu0 0
    %890 = vmatpush1.bf16.msra.mxu0 0
    %891 = vmatprep.subr.bf16.mxu0 0
    %892 = vmatpush1.bf16.msra.mxu0 0
    %893 = vmatprep.subr.bf16.mxu0 0
    %894 = vmatpush1.bf16.msra.mxu0 0
    %895 = vmatprep.subr.bf16.mxu0 0
    %896 = vmatpush1.bf16.msra.mxu0 0
    %897 = vmatprep.subr.bf16.mxu0 0
    %898 = vmatpush1.bf16.msra.mxu0 0
    %899 = vmatprep.subr.bf16.mxu0 0
    %900 = vmatpush1.bf16.msra.mxu0 0
    %901 = vmatprep.subr.bf16.mxu0 0
    %902 = vmatpush1.bf16.msra.mxu0 0
    %903 = vmatprep.subr.bf16.mxu0 0
    %904 = vmatpush1.bf16.msra.mxu0 0
    %905 = vmatprep.subr.bf16.mxu0 0
    %906 = vmatpush1.bf16.msra.mxu0 0
    %907 = vmatprep.subr.bf16.mxu0 0
    %908 = vmatpush1.bf16.msra.mxu0 0
    %909 = vmatprep.mubr.bf16.mxu0 0
    %910 = vmatmul.mubr.bf16.gmra.mrb[0].mxu0 %v872
    %v911 = vpop.f32.mrb[0].mxu0
    %v912 = vadd.f32 0.0, %v911
    %v913 = vpop.f32.mrb[0].mxu0
    %v914 = vpop.f32.mrb[0].mxu0
    %v915 = vadd.f32 0.0, %v914
    %v916 = vpop.f32.mrb[0].mxu0
    %917 = vmatprep.mubr.bf16.mxu0 0
    %918 = vmatmul.mubr.bf16.gmra.mrb[0].mxu0 %v875
    %v919 = vpop.f32.mrb[0].mxu0
    %v920 = vadd.f32 0.0, %v919
    %v921 = vpop.f32.mrb[0].mxu0
    %v922 = vpop.f32.mrb[0].mxu0
    %v923 = vadd.f32 0.0, %v922
    %v924 = vpop.f32.mrb[0].mxu0
    %925 = vdwg.mxu0
    %v926 = vmul.f32 %v912, %v546
    %v927 = vmul.f32 %v915, %v547
    %v928 = vmul.f32 %v920, %v548
    %v929 = vmul.f32 %v923, %v549
    %v930 = vmul.f32 %v926, %v439
    %v931 = vmul.f32 %v927, %v440
    %v932 = vmul.f32 %v928, %v441
    %v933 = vmul.f32 %v929, %v442
    %934 = vst [vmem:[#allocation2 + $0x20] sm:$0xff] %v930
    %935 = vst [vmem:[#allocation2 + $0x28] sm:$0xff] %v931
    %936 = vst [vmem:[#allocation2 + $0x30] sm:$0xff] %v932
    %937 = vst [vmem:[#allocation2 + $0x38] sm:$0xff] %v933
    %938 = vst [vmem:[#allocation2 + $0xa0] sm:$0xff] %v926
    %939 = vst [vmem:[#allocation2 + $0xa8] sm:$0xff] %v927
    %940 = vst [vmem:[#allocation2 + $0xb0] sm:$0xff] %v928
    %941 = vst [vmem:[#allocation2 + $0xb8] sm:$0xff] %v929
    %v942 = vld [vmem:[#allocation6 + $0xc0] sm:$0xf]
    %v943 = vld [vmem:[#allocation6 + $0xc4] sm:$0xf]
    %v944 = vld [vmem:[#allocation6 + $0xc8] sm:$0xf]
    %v945 = vld [vmem:[#allocation6 + $0xcc] sm:$0xf]
    %v946 = vpack.c.bf16 %v927, %v926
    %v947 = vpack.c.bf16 %v929, %v928
    %v952 = vunpack.c.l.b16 %v942
    %v953 = vunpack.c.l.b16 %v943
    %v954 = vunpack.c.l.b16 %v944
    %v955 = vunpack.c.l.b16 %v945
    %v956 = vpack.c.b16 %v953, %v952
    %v957 = vpack.c.b16 %v955, %v954
    %v959 = vsel %vm482, %v956, 0
    %v962 = vsel %vm482, %v957, 0
    %964 = vmatprep.subr.bf16.mxu0 0
    %965 = vmatpush1.bf16.msra.mxu0 %v946
    %966 = vmatprep.subr.bf16.mxu0 0
    %967 = vmatpush1.bf16.msra.mxu0 %v947
    %968 = vmatprep.subr.bf16.mxu0 0
    %969 = vmatpush1.bf16.msra.mxu0 0
    %970 = vmatprep.subr.bf16.mxu0 0
    %971 = vmatpush1.bf16.msra.mxu0 0
    %972 = vmatprep.subr.bf16.mxu0 0
    %973 = vmatpush1.bf16.msra.mxu0 0
    %974 = vmatprep.subr.bf16.mxu0 0
    %975 = vmatpush1.bf16.msra.mxu0 0
    %976 = vmatprep.subr.bf16.mxu0 0
    %977 = vmatpush1.bf16.msra.mxu0 0
    %978 = vmatprep.subr.bf16.mxu0 0
    %979 = vmatpush1.bf16.msra.mxu0 0
    %980 = vmatprep.subr.bf16.mxu0 0
    %981 = vmatpush1.bf16.msra.mxu0 0
    %982 = vmatprep.subr.bf16.mxu0 0
    %983 = vmatpush1.bf16.msra.mxu0 0
    %984 = vmatprep.subr.bf16.mxu0 0
    %985 = vmatpush1.bf16.msra.mxu0 0
    %986 = vmatprep.subr.bf16.mxu0 0
    %987 = vmatpush1.bf16.msra.mxu0 0
    %988 = vmatprep.subr.bf16.mxu0 0
    %989 = vmatpush1.bf16.msra.mxu0 0
    %990 = vmatprep.subr.bf16.mxu0 0
    %991 = vmatpush1.bf16.msra.mxu0 0
    %992 = vmatprep.subr.bf16.mxu0 0
    %993 = vmatpush1.bf16.msra.mxu0 0
    %994 = vmatprep.subr.bf16.mxu0 0
    %995 = vmatpush1.bf16.msra.mxu0 0
    %996 = vmatprep.mubr.bf16.mxu0 0
    %997 = vmatmul.mubr.bf16.gmra.mrb[0].mxu0 %v959
    %v998 = vpop.f32.mrb[0].mxu0
    %v999 = vadd.f32 0.0, %v998
    %v1000 = vpop.f32.mrb[0].mxu0
    %v1001 = vpop.f32.mrb[0].mxu0
    %v1002 = vadd.f32 0.0, %v1001
    %v1003 = vpop.f32.mrb[0].mxu0
    %1004 = vmatprep.mubr.bf16.mxu0 0
    %1005 = vmatmul.mubr.bf16.gmra.mrb[0].mxu0 %v962
    %v1006 = vpop.f32.mrb[0].mxu0
    %v1007 = vadd.f32 0.0, %v1006
    %v1008 = vpop.f32.mrb[0].mxu0
    %v1009 = vpop.f32.mrb[0].mxu0
    %v1010 = vadd.f32 0.0, %v1009
    %v1011 = vpop.f32.mrb[0].mxu0
    %1012 = vdwg.mxu0
    %v1013 = vmul.f32 %v999, %v458
    %v1014 = vmul.f32 %v1002, %v459
    %v1015 = vmul.f32 %v1007, %v460
    %v1016 = vmul.f32 %v1010, %v461
    %v1017 = vmul.f32 %v1013, %v435
    %v1018 = vmul.f32 %v1014, %v436
    %v1019 = vmul.f32 %v1015, %v437
    %v1020 = vmul.f32 %v1016, %v438
    %1021 = vst [vmem:[#allocation2] sm:$0xff] %v1017
    %1022 = vst [vmem:[#allocation2 + $0x8] sm:$0xff] %v1018
    %1023 = vst [vmem:[#allocation2 + $0x10] sm:$0xff] %v1019
    %1024 = vst [vmem:[#allocation2 + $0x18] sm:$0xff] %v1020
    %1025 = vst [vmem:[#allocation2 + $0x80] sm:$0xff] %v1013
    %1026 = vst [vmem:[#allocation2 + $0x88] sm:$0xff] %v1014
    %1027 = vst [vmem:[#allocation2 + $0x90] sm:$0xff] %v1015
    %1028 = vst [vmem:[#allocation2 + $0x98] sm:$0xff] %v1016
    %v1029 = vld [vmem:[#allocation8] sm:$0xff]
    %v1030 = vld [vmem:[#allocation8 + $0x8] sm:$0xf]
    %v1031 = vld [vmem:[#allocation8 + $0xc] sm:$0x11]
    %v1032 = vld [vmem:[#allocation8 + $0x14] sm:$0x1]
    %v1033 = vld [vmem:[#allocation2] sm:$0xff]
    %v1034 = vld [vmem:[#allocation2 + $0x8] sm:$0xff]
    %v1035 = vld [vmem:[#allocation2 + $0x10] sm:$0xff]
    %v1036 = vld [vmem:[#allocation2 + $0x18] sm:$0xff]
    %v1037 = vld [vmem:[#allocation2 + $0x20] sm:$0xff]
    %v1038 = vld [vmem:[#allocation2 + $0x28] sm:$0xff]
    %v1039 = vld [vmem:[#allocation2 + $0x30] sm:$0xff]
    %v1040 = vld [vmem:[#allocation2 + $0x38] sm:$0xff]
    %v1041 = vld [vmem:[#allocation2 + $0x40] sm:$0xff]
    %v1042 = vld [vmem:[#allocation2 + $0x48] sm:$0xff]
    %v1043 = vld [vmem:[#allocation2 + $0x50] sm:$0xff]
    %v1044 = vld [vmem:[#allocation2 + $0x58] sm:$0xff]
    %v1045 = vld [vmem:[#allocation2 + $0x60] sm:$0xff]
    %v1046 = vld [vmem:[#allocation2 + $0x68] sm:$0xff]
    %v1047 = vld [vmem:[#allocation2 + $0x70] sm:$0xff]
    %v1048 = vld [vmem:[#allocation2 + $0x78] sm:$0xff]
    %v1049 = vld [vmem:[#allocation2 + $0x80] sm:$0xff]
    %v1050 = vld [vmem:[#allocation2 + $0x88] sm:$0xff]
    %v1051 = vld [vmem:[#allocation2 + $0x90] sm:$0xff]
    %v1052 = vld [vmem:[#allocation2 + $0x98] sm:$0xff]
    %v1053 = vld [vmem:[#allocation2 + $0xa0] sm:$0xff]
    %v1054 = vld [vmem:[#allocation2 + $0xa8] sm:$0xff]
    %v1055 = vld [vmem:[#allocation2 + $0xb0] sm:$0xff]
    %v1056 = vld [vmem:[#allocation2 + $0xb8] sm:$0xff]
    %v1057 = vld [vmem:[#allocation2 + $0xc0] sm:$0xff]
    %v1058 = vld [vmem:[#allocation2 + $0xc8] sm:$0xff]
    %v1059 = vld [vmem:[#allocation2 + $0xd0] sm:$0xff]
    %v1060 = vld [vmem:[#allocation2 + $0xd8] sm:$0xff]
    %v1061 = vld [vmem:[#allocation2 + $0xe0] sm:$0xff]
    %v1062 = vld [vmem:[#allocation2 + $0xe8] sm:$0xff]
    %v1063 = vld [vmem:[#allocation2 + $0xf0] sm:$0xff]
    %v1064 = vld [vmem:[#allocation2 + $0xf8] sm:$0xff]
    %v1065 = vld [vmem:[#allocation2 + $0x100] sm:$0x3]
    %v1066 = vpack.c.bf16 %v1034, %v1033
    %v1067 = vpack.c.bf16 %v1036, %v1035
    %v1068 = vpack.c.bf16 %v1038, %v1037
    %v1069 = vpack.c.bf16 %v1040, %v1039
    %v1070 = vpack.c.bf16 %v1042, %v1041
    %v1071 = vpack.c.bf16 %v1044, %v1043
    %v1072 = vpack.c.bf16 %v1046, %v1045
    %v1073 = vpack.c.bf16 %v1048, %v1047
    %v1074 = vpack.c.bf16 %v1050, %v1049
    %v1075 = vpack.c.bf16 %v1052, %v1051
    %v1076 = vpack.c.bf16 %v1054, %v1053
    %v1077 = vpack.c.bf16 %v1056, %v1055
    %v1078 = vpack.c.bf16 %v1058, %v1057
    %v1079 = vpack.c.bf16 %v1060, %v1059
    %v1080 = vpack.c.bf16 %v1062, %v1061
    %v1081 = vpack.c.bf16 %v1064, %v1063
    %v1082 = vpack.c.bf16 %v1065, %v1065
    %v1087 = vunpack.c.l.b16 %v1029
    %v1088 = vunpack.c.h.b16 %v1029
    %v1089 = vunpack.c.l.b16 %v1030
    %v1090 = vunpack.c.l.b16 %v1031
    %v1091 = vunpack.c.h.b16 %v1031
    %v1092 = vunpack.c.l.b16 %v1032
    %v1093 = vpack.c.b16 %v1090, %v1087
    %v1094 = vpack.c.b16 %v1091, %v1088
    %v1095 = vpack.c.b16 %v1092, %v1089
    %vm1098 = vcmask 15360
    %v1100 = vsel %vm1098, %v1095, 0
    %vm1102 = vcmask 1040384
    %v1104 = vsel %vm1102, %v1082, 0
    %1106 = vmatprep.subr.bf16.mxu0 0
    %1107 = vmatpush1.bf16.msra.mxu0 %v1066
    %1108 = vmatprep.subr.bf16.mxu0 0
    %1109 = vmatpush1.bf16.msra.mxu0 %v1067
    %1110 = vmatprep.subr.bf16.mxu0 0
    %1111 = vmatpush1.bf16.msra.mxu0 %v1068
    %1112 = vmatprep.subr.bf16.mxu0 0
    %1113 = vmatpush1.bf16.msra.mxu0 %v1069
    %1114 = vmatprep.subr.bf16.mxu0 0
    %1115 = vmatpush1.bf16.msra.mxu0 %v1070
    %1116 = vmatprep.subr.bf16.mxu0 0
    %1117 = vmatpush1.bf16.msra.mxu0 %v1071
    %1118 = vmatprep.subr.bf16.mxu0 0
    %1119 = vmatpush1.bf16.msra.mxu0 %v1072
    %1120 = vmatprep.subr.bf16.mxu0 0
    %1121 = vmatpush1.bf16.msra.mxu0 %v1073
    %1122 = vmatprep.subr.bf16.mxu0 0
    %1123 = vmatpush1.bf16.msra.mxu0 %v1074
    %1124 = vmatprep.subr.bf16.mxu0 0
    %1125 = vmatpush1.bf16.msra.mxu0 %v1075
    %1126 = vmatprep.subr.bf16.mxu0 0
    %1127 = vmatpush1.bf16.msra.mxu0 %v1076
    %1128 = vmatprep.subr.bf16.mxu0 0
    %1129 = vmatpush1.bf16.msra.mxu0 %v1077
    %1130 = vmatprep.subr.bf16.mxu0 0
    %1131 = vmatpush1.bf16.msra.mxu0 %v1078
    %1132 = vmatprep.subr.bf16.mxu0 0
    %1133 = vmatpush1.bf16.msra.mxu0 %v1079
    %1134 = vmatprep.subr.bf16.mxu0 0
    %1135 = vmatpush1.bf16.msra.mxu0 %v1080
    %1136 = vmatprep.subr.bf16.mxu0 0
    %1137 = vmatpush1.bf16.msra.mxu0 %v1081
    %1138 = vmatprep.mubr.bf16.mxu0 %v1094
    %1139 = vmatmul.mubr.bf16.gmra.mrb[0].mxu0 %v1093
    %v1140 = vpop.f32.mrb[0].mxu0
    %v1141 = vadd.f32 0.0, %v1140
    %v1142 = vpop.f32.mrb[0].mxu0
    %v1143 = vpop.f32.mrb[0].mxu0
    %v1144 = vadd.f32 0.0, %v1143
    %v1145 = vpop.f32.mrb[0].mxu0
    %1146 = vdwg.mxu0
    %1147 = vmatprep.subr.bf16.mxu0 0
    %1148 = vmatpush1.bf16.msra.mxu0 %v1104
    %1149 = vmatprep.subr.bf16.mxu0 0
    %1150 = vmatpush1.bf16.msra.mxu0 0
    %1151 = vmatprep.subr.bf16.mxu0 0
    %1152 = vmatpush1.bf16.msra.mxu0 0
    %1153 = vmatprep.subr.bf16.mxu0 0
    %1154 = vmatpush1.bf16.msra.mxu0 0
    %1155 = vmatprep.subr.bf16.mxu0 0
    %1156 = vmatpush1.bf16.msra.mxu0 0
    %1157 = vmatprep.subr.bf16.mxu0 0
    %1158 = vmatpush1.bf16.msra.mxu0 0
    %1159 = vmatprep.subr.bf16.mxu0 0
    %1160 = vmatpush1.bf16.msra.mxu0 0
    %1161 = vmatprep.subr.bf16.mxu0 0
    %1162 = vmatpush1.bf16.msra.mxu0 0
    %1163 = vmatprep.subr.bf16.mxu0 0
    %1164 = vmatpush1.bf16.msra.mxu0 0
    %1165 = vmatprep.subr.bf16.mxu0 0
    %1166 = vmatpush1.bf16.msra.mxu0 0
    %1167 = vmatprep.subr.bf16.mxu0 0
    %1168 = vmatpush1.bf16.msra.mxu0 0
    %1169 = vmatprep.subr.bf16.mxu0 0
    %1170 = vmatpush1.bf16.msra.mxu0 0
    %1171 = vmatprep.subr.bf16.mxu0 0
    %1172 = vmatpush1.bf16.msra.mxu0 0
    %1173 = vmatprep.subr.bf16.mxu0 0
    %1174 = vmatpush1.bf16.msra.mxu0 0
    %1175 = vmatprep.subr.bf16.mxu0 0
    %1176 = vmatpush1.bf16.msra.mxu0 0
    %1177 = vmatprep.subr.bf16.mxu0 0
    %1178 = vmatpush1.bf16.msra.mxu0 0
    %1179 = vmatprep.mubr.bf16.mxu0 0
    %1180 = vmatmul.mubr.bf16.gmra.mrb[0].mxu0 %v1100
    %v1181 = vpop.f32.mrb[0].mxu0
    %v1182 = vadd.f32 %v1141, %v1181
    %v1183 = vpop.f32.mrb[0].mxu0
    %v1184 = vpop.f32.mrb[0].mxu0
    %v1185 = vadd.f32 %v1144, %v1184
    %v1186 = vpop.f32.mrb[0].mxu0
    %1187 = vdwg.mxu0
    %v1188 = vmul.f32 %v1182, 0.5
    %v1189 = vmul.f32 %v1185, 0.5
    %v1190 = vmul.f32 %v57, 0.5
    %v1191 = vmul.f32 %v58, 0.5
    %v1192 = vadd.f32 %v1188, %v1190
    %v1193 = vadd.f32 %v1189, %v1191
    %1194 = vst [vmem:[#allocation9] sm:$0xff] %v1192
    %1195 = vst [vmem:[#allocation9 + $0x8] sm:$0x3] %v1193
    // Predicated region
    $region26: #{tpu_custom_call.1} parent=1 // pred_check
      _
    $region27: #{tpu_custom_call.1} parent=1 // pred_check_branch
      %1197 = sbr.rel (0) target = $region29
    $region28: #{tpu_custom_call.1} parent=1 // pred_region
      %s1199 = ssub.s32 256, 256
      %1200 = vsyncadd [#allocation5], %s1199
      %s1201 = sshll.u32 [#allocation9], 4
      %s1202 = int_to_ptr.vmem [resolvable:$true] %s1201
      %1207 = dma.vmem_to_hbm [thread:$0]  %s1202, 256, %s3, [#allocation5], 128, 128, 8
    $region29: #{tpu_custom_call.1} parent=1 // pred_fallthru
      _
    // Predicated region
    $region30: #{tpu_custom_call.1} parent=1 // pred_check
      _
    $region31: #{tpu_custom_call.1} parent=1 // pred_check_branch
      %1209 = sbr.rel (0) target = $region33
    $region32: #{tpu_custom_call.1} parent=1 // pred_region
      %1210 = dma.done [#allocation5], 256
    $region33: #{tpu_custom_call.1} parent=1 // pred_fallthru
      _
    %1211 = vsyncpa [#allocation4], 1
    %1212 = vsyncpa [#allocation7], 1
    %1213 = vsyncpa [#allocation5], 1

</llo_original>
